<compile_context>
chip_gen: v5e
topology: v5e:2x2
jax: 0.10.0
libtpu: 0.0.40
codegen_flags: <defaults>
</compile_context>

<pallas_src>
import functools

import jax
import jax.numpy as jnp
from jax.experimental import pallas as pl
from jax.experimental.pallas import tpu as pltpu


def _cdiv(a, b):
    return (a + b - 1) // b


def _leaky_relu(x, slope=0.2):
    return jnp.where(x > 0, x, slope * x)


def _pick_tb(batch, tb_max=1024):
    """Pick a batch tile: multiple of 256 (MXU M-fill on v6e/v7x), capped at
    tb_max, and >= 2 tiles when the batch allows (v7x dual-TensorCore)."""
    b128 = _cdiv(batch, 128) * 128
    if b128 <= 256:
        return b128
    tb = _cdiv(_cdiv(b128, 2), 256) * 256
    return max(256, min(tb_max, tb))


def discriminator_kernel(x_ref,
                         w1_ref, b1_ref,
                         w2_ref, b2_ref,
                         w3_ref, b3_ref,
                         w4_ref, b4_ref,
                         o_ref):
    # Cast activations to bf16 in-VMEM (x stays f32 in HBM -> half the HBM
    # traffic of a pre-materialized bf16 copy; VPU has plenty of slack).
    x = x_ref[...].astype(jnp.bfloat16)                      # (tb, D)

    # Layer 1: (tb, D) @ (D, 512), f32 accumulate on MXU.
    h = jnp.dot(x, w1_ref[...], preferred_element_type=jnp.float32)
    h = _leaky_relu(h + b1_ref[...])
    # Dropout(0.3) -> identity (eval mode)

    # Layer 2: (tb, 512) @ (512, 256)
    h = jnp.dot(h.astype(jnp.bfloat16), w2_ref[...],
                preferred_element_type=jnp.float32)
    h = _leaky_relu(h + b2_ref[...])

    # Layer 3: (tb, 256) @ (256, 128)
    h = jnp.dot(h.astype(jnp.bfloat16), w3_ref[...],
                preferred_element_type=jnp.float32)
    h = _leaky_relu(h + b3_ref[...])                         # (tb, 128) f32

    # Layer 4: single output column computed as w4(8,128) @ h(tb,128)^T on the
    # MXU -> (8, tb); row 0 is the logit row, already lane-dense (no (tb,1)
    # column + relayout).  Cost is negligible next to layers 1-3.
    l4 = jax.lax.dot_general(
        w4_ref[...], h.astype(jnp.bfloat16),
        dimension_numbers=(((1,), (1,)), ((), ())),
        preferred_element_type=jnp.float32)                  # (8, tb)
    logits = l4[0:1, :] + b4_ref[0, 0]                       # (1, tb), scalar bias from SMEM

    # Sigmoid: exp + approximate reciprocal both on the EUP (free slot).
    prob = pl.reciprocal(1.0 + jnp.exp(-logits), approx=True)

    # Lane-dense store: (1, 1, tb) block -> unmasked vst.
    o_ref[...] = prob.reshape(o_ref.shape).astype(o_ref.dtype)


def discriminator_forward(x, params, *, tb=None):
    """x: [B, input_dim] float32. params: transposed f32 weights [in, out] + biases.

    Returns sigmoid probabilities of shape [B, 1] (float32).
    """
    B, D = x.shape
    x = x.astype(jnp.float32)

    if tb is None:
        tb = _pick_tb(B)
    n_tiles = _cdiv(B, tb)
    b_pad = n_tiles * tb
    if b_pad != B:
        # Zero rows are safe (they produce finite outputs that get sliced off).
        x = jnp.pad(x, ((0, b_pad - B), (0, 0)))

    # Weights: bf16 for the MXU (one-time, tiny, VMEM-resident across tiles).
    w1 = params["w1"].astype(jnp.bfloat16)                         # (D, 512)
    w2 = params["w2"].astype(jnp.bfloat16)                         # (512, 256)
    w3 = params["w3"].astype(jnp.bfloat16)                         # (256, 128)
    # Last-layer column (128,1) -> row replicated to (8,128) so the trans-rhs
    # matmul has a sublane-aligned M; only row 0 of the result is used.
    w4 = jnp.broadcast_to(params["w4"].reshape(1, 128),
                          (8, 128)).astype(jnp.bfloat16)
    # Biases stay f32 (VPU adds).
    b1 = params["b1"].astype(jnp.float32).reshape(1, 512)
    b2 = params["b2"].astype(jnp.float32).reshape(1, 256)
    b3 = params["b3"].astype(jnp.float32).reshape(1, 128)
    b4 = params["b4"].astype(jnp.float32).reshape(1, 1)

    const2 = lambda i: (0, 0)   # weights/biases resident across batch tiles
    in_specs = [
        pl.BlockSpec((tb, D), lambda i: (i, 0)),     # x tile streams (f32)
        pl.BlockSpec((D, 512), const2),              # w1
        pl.BlockSpec((1, 512), const2),              # b1
        pl.BlockSpec((512, 256), const2),            # w2
        pl.BlockSpec((1, 256), const2),              # b2
        pl.BlockSpec((256, 128), const2),            # w3
        pl.BlockSpec((1, 128), const2),              # b3
        pl.BlockSpec((8, 128), const2),              # w4 (row-replicated)
        pl.BlockSpec((1, 1), const2,
                     memory_space=pltpu.MemorySpace.SMEM),   # b4 scalar
    ]
    out_specs = pl.BlockSpec((1, 1, tb), lambda i: (i, 0, 0))
    out_shape = jax.ShapeDtypeStruct((n_tiles, 1, tb), jnp.float32)

    # Right-size VMEM limit (v7x only has 64 MiB physical): double-buffered x
    # tile + resident weights + intermediates, with headroom.
    weight_bytes = 2 * (D * 512 + 512 * 256 + 256 * 128 + 8 * 128)
    act_bytes = tb * (D * 4 + (512 + 256 + 128) * 4)
    vmem_limit = int(min(max(2 * weight_bytes + 2 * act_bytes + (8 << 20),
                             16 << 20), 64 << 20))

    flops = 2 * b_pad * (D * 512 + 512 * 256 + 256 * 128 + 8 * 128)
    bytes_accessed = 4 * b_pad * D + weight_bytes + (512 + 256 + 128 + 1) * 4 + 4 * b_pad
    cost = pl.CostEstimate(flops=flops,
                           transcendentals=b_pad,
                           bytes_accessed=bytes_accessed)

    out = pl.pallas_call(
        discriminator_kernel,
        out_shape=out_shape,
        grid=(n_tiles,),
        in_specs=in_specs,
        out_specs=out_specs,
        compiler_params=pltpu.CompilerParams(
            dimension_semantics=("parallel",),
            vmem_limit_bytes=vmem_limit,
        ),
        cost_estimate=cost,
    )(x, w1, b1, w2, b2, w3, b3, w4, b4)

    return out.reshape(b_pad, 1)[:B]


def init_params(key, input_dim):
    """Deterministic PyTorch-style Linear init: U(-1/sqrt(fan_in), 1/sqrt(fan_in)).
    Weights are stored transposed: [in_features, out_features]."""
    dims = [(input_dim, 512), (512, 256), (256, 128), (128, 1)]
    params = {}
    for idx, (fan_in, fan_out) in enumerate(dims, start=1):
        key, kw, kb = jax.random.split(key, 3)
        bound = 1.0 / jnp.sqrt(jnp.float32(fan_in))
        params[f"w{idx}"] = jax.random.uniform(
            kw, (fan_in, fan_out), jnp.float32, minval=-bound, maxval=bound)
        params[f"b{idx}"] = jax.random.uniform(
            kb, (1, fan_out), jnp.float32, minval=-bound, maxval=bound)
    return params


if __name__ == "__main__":
    key = jax.random.PRNGKey(0)
    input_dim = 64
    batch = 200   # not a multiple of the tile -> exercises batch padding

    kx, kp = jax.random.split(key)
    x = jax.random.normal(kx, (batch, input_dim), dtype=jnp.float32)
    params = init_params(kp, input_dim)

    fwd = jax.jit(functools.partial(discriminator_forward))
    out = jax.block_until_ready(fwd(x, params))

    # Sanity checks: shape and sigmoid range.
    assert out.shape == (batch, 1)
    assert bool(jnp.all((out >= 0.0) & (out <= 1.0)))

    # Cross-check against a pure-JAX f32 reference (tolerance loosened for
    # bf16 matmul inputs + approximate EUP reciprocal).
    def ref(x, p):
        def lrelu(v):
            return jnp.where(v > 0, v, 0.2 * v)
        h = lrelu(x @ p["w1"] + p["b1"])
        h = lrelu(h @ p["w2"] + p["b2"])
        h = lrelu(h @ p["w3"] + p["b3"])
        return jax.nn.sigmoid(h @ p["w4"] + p["b4"])

    ref_out = ref(x, params)
    assert bool(jnp.allclose(out, ref_out, atol=2e-2, rtol=2e-2)), (
        float(jnp.max(jnp.abs(out - ref_out))))

    print("KERNEL_OK")
</pallas_src>

<mosaic_0001>
module attributes {stable_mosaic.version = 11 : i64} {
  func.func @discriminator_kernel(%arg0: i32, %arg1: memref<256x64xf32, #tpu.memory_space<vmem>>, %arg2: memref<64x512xbf16, #tpu.memory_space<vmem>>, %arg3: memref<1x512xf32, #tpu.memory_space<vmem>>, %arg4: memref<512x256xbf16, #tpu.memory_space<vmem>>, %arg5: memref<1x256xf32, #tpu.memory_space<vmem>>, %arg6: memref<256x128xbf16, #tpu.memory_space<vmem>>, %arg7: memref<1x128xf32, #tpu.memory_space<vmem>>, %arg8: memref<8x128xbf16, #tpu.memory_space<vmem>>, %arg9: memref<1x1xf32, #tpu.memory_space<smem>>, %arg10: memref<1x1x256xf32, #tpu.memory_space<vmem>>) attributes {dimension_semantics = [#tpu.dimension_semantics<parallel>], iteration_bounds = array<i64: 1>, scalar_prefetch = 0 : i64, scratch_operands = 0 : i64, tpu.core_type = #tpu.core_type<tc>, window_params = [{transform_indices = @transform_0, window_bounds = array<i64: 256, 64>}, {pipeline_mode = #tpu.pipeline_mode<synchronous>, transform_indices = @transform_1, window_bounds = array<i64: 64, 512>}, {pipeline_mode = #tpu.pipeline_mode<synchronous>, transform_indices = @transform_2, window_bounds = array<i64: 1, 512>}, {pipeline_mode = #tpu.pipeline_mode<synchronous>, transform_indices = @transform_3, window_bounds = array<i64: 512, 256>}, {pipeline_mode = #tpu.pipeline_mode<synchronous>, transform_indices = @transform_4, window_bounds = array<i64: 1, 256>}, {pipeline_mode = #tpu.pipeline_mode<synchronous>, transform_indices = @transform_5, window_bounds = array<i64: 256, 128>}, {pipeline_mode = #tpu.pipeline_mode<synchronous>, transform_indices = @transform_6, window_bounds = array<i64: 1, 128>}, {pipeline_mode = #tpu.pipeline_mode<synchronous>, transform_indices = @transform_7, window_bounds = array<i64: 8, 128>}, {transform_indices = @transform_8, window_bounds = array<i64: 1, 1>}, {transform_indices = @transform_9, window_bounds = array<i64: 1, 1, 256>}]} {
    %c0 = arith.constant 0 : index
    %c0_0 = arith.constant 0 : index
    %0 = vector.load %arg1[%c0, %c0_0] : memref<256x64xf32, #tpu.memory_space<vmem>>, vector<256x64xf32>
    %1 = arith.truncf %0 : vector<256x64xf32> to vector<256x64xbf16>
    %c0_1 = arith.constant 0 : index
    %c0_2 = arith.constant 0 : index
    %2 = vector.load %arg2[%c0_1, %c0_2] : memref<64x512xbf16, #tpu.memory_space<vmem>>, vector<64x512xbf16>
    %cst = arith.constant dense<0.000000e+00> : vector<256x512xf32>
    %3 = tpu.matmul %1, %2, %cst {dimension_numbers = #tpu.dot_dimension_numbers<[1], [0], [0], [1], [0, 0, 1, 1], [], []>} : vector<256x64xbf16>, vector<64x512xbf16>, vector<256x512xf32> -> vector<256x512xf32>
    %c0_3 = arith.constant 0 : index
    %c0_4 = arith.constant 0 : index
    %4 = vector.load %arg3[%c0_3, %c0_4] : memref<1x512xf32, #tpu.memory_space<vmem>>, vector<1x512xf32>
    %5 = vector.broadcast %4 : vector<1x512xf32> to vector<256x512xf32>
    %6 = arith.addf %3, %5 : vector<256x512xf32>
    %cst_5 = arith.constant 0.000000e+00 : f32
    %7 = vector.broadcast %cst_5 : f32 to vector<256x512xf32>
    %8 = arith.cmpf ogt, %6, %7 : vector<256x512xf32>
    %cst_6 = arith.constant 2.000000e-01 : f32
    %9 = vector.broadcast %cst_6 : f32 to vector<256x512xf32>
    %10 = arith.mulf %9, %6 : vector<256x512xf32>
    %11 = arith.select %8, %6, %10 : vector<256x512xi1>, vector<256x512xf32>
    %12 = arith.truncf %11 : vector<256x512xf32> to vector<256x512xbf16>
    %c0_7 = arith.constant 0 : index
    %c0_8 = arith.constant 0 : index
    %13 = vector.load %arg4[%c0_7, %c0_8] : memref<512x256xbf16, #tpu.memory_space<vmem>>, vector<512x256xbf16>
    %cst_9 = arith.constant dense<0.000000e+00> : vector<256x256xf32>
    %14 = tpu.matmul %12, %13, %cst_9 {dimension_numbers = #tpu.dot_dimension_numbers<[1], [0], [0], [1], [0, 0, 1, 1], [], []>} : vector<256x512xbf16>, vector<512x256xbf16>, vector<256x256xf32> -> vector<256x256xf32>
    %c0_10 = arith.constant 0 : index
    %c0_11 = arith.constant 0 : index
    %15 = vector.load %arg5[%c0_10, %c0_11] : memref<1x256xf32, #tpu.memory_space<vmem>>, vector<1x256xf32>
    %16 = vector.broadcast %15 : vector<1x256xf32> to vector<256x256xf32>
    %17 = arith.addf %14, %16 : vector<256x256xf32>
    %cst_12 = arith.constant 0.000000e+00 : f32
    %18 = vector.broadcast %cst_12 : f32 to vector<256x256xf32>
    %19 = arith.cmpf ogt, %17, %18 : vector<256x256xf32>
    %cst_13 = arith.constant 2.000000e-01 : f32
    %20 = vector.broadcast %cst_13 : f32 to vector<256x256xf32>
    %21 = arith.mulf %20, %17 : vector<256x256xf32>
    %22 = arith.select %19, %17, %21 : vector<256x256xi1>, vector<256x256xf32>
    %23 = arith.truncf %22 : vector<256x256xf32> to vector<256x256xbf16>
    %c0_14 = arith.constant 0 : index
    %c0_15 = arith.constant 0 : index
    %24 = vector.load %arg6[%c0_14, %c0_15] : memref<256x128xbf16, #tpu.memory_space<vmem>>, vector<256x128xbf16>
    %cst_16 = arith.constant dense<0.000000e+00> : vector<256x128xf32>
    %25 = tpu.matmul %23, %24, %cst_16 {dimension_numbers = #tpu.dot_dimension_numbers<[1], [0], [0], [1], [0, 0, 1, 1], [], []>} : vector<256x256xbf16>, vector<256x128xbf16>, vector<256x128xf32> -> vector<256x128xf32>
    %c0_17 = arith.constant 0 : index
    %c0_18 = arith.constant 0 : index
    %26 = vector.load %arg7[%c0_17, %c0_18] : memref<1x128xf32, #tpu.memory_space<vmem>>, vector<1x128xf32>
    %27 = vector.broadcast %26 : vector<1x128xf32> to vector<256x128xf32>
    %28 = arith.addf %25, %27 : vector<256x128xf32>
    %cst_19 = arith.constant 0.000000e+00 : f32
    %29 = vector.broadcast %cst_19 : f32 to vector<256x128xf32>
    %30 = arith.cmpf ogt, %28, %29 : vector<256x128xf32>
    %cst_20 = arith.constant 2.000000e-01 : f32
    %31 = vector.broadcast %cst_20 : f32 to vector<256x128xf32>
    %32 = arith.mulf %31, %28 : vector<256x128xf32>
    %33 = arith.select %30, %28, %32 : vector<256x128xi1>, vector<256x128xf32>
    %c0_21 = arith.constant 0 : index
    %c0_22 = arith.constant 0 : index
    %34 = vector.load %arg8[%c0_21, %c0_22] : memref<8x128xbf16, #tpu.memory_space<vmem>>, vector<8x128xbf16>
    %35 = arith.truncf %33 : vector<256x128xf32> to vector<256x128xbf16>
    %cst_23 = arith.constant dense<0.000000e+00> : vector<8x256xf32>
    %36 = tpu.matmul %34, %35, %cst_23 {dimension_numbers = #tpu.dot_dimension_numbers<[1], [1], [0], [0], [0, 0, 1, 0], [], []>} : vector<8x128xbf16>, vector<256x128xbf16>, vector<8x256xf32> -> vector<8x256xf32>
    %37 = vector.extract_strided_slice %36 {offsets = [0, 0], sizes = [1, 256], strides = [1, 1]} : vector<8x256xf32> to vector<1x256xf32>
    %c0_24 = arith.constant 0 : index
    %c0_25 = arith.constant 0 : index
    %38 = memref.load %arg9[%c0_24, %c0_25] : memref<1x1xf32, #tpu.memory_space<smem>>
    %39 = vector.broadcast %38 : f32 to vector<1x256xf32>
    %40 = arith.addf %37, %39 : vector<1x256xf32>
    %cst_26 = arith.constant 0.000000e+00 : f32
    %41 = vector.broadcast %cst_26 : f32 to vector<1x256xf32>
    %42 = arith.subf %41, %40 : vector<1x256xf32>
    %43 = math.exp %42 : vector<1x256xf32>
    %cst_27 = arith.constant 1.000000e+00 : f32
    %44 = vector.broadcast %cst_27 : f32 to vector<1x256xf32>
    %45 = arith.addf %44, %43 : vector<1x256xf32>
    %46 = tpu.reciprocal %45 {approx = true} : vector<1x256xf32> -> vector<1x256xf32>
    %47 = vector.shape_cast %46 : vector<1x256xf32> to vector<1x1x256xf32>
    %c0_28 = arith.constant 0 : index
    %c0_29 = arith.constant 0 : index
    %c0_30 = arith.constant 0 : index
    %48 = vector.load %arg10[%c0_28, %c0_29, %c0_30] : memref<1x1x256xf32, #tpu.memory_space<vmem>>, vector<1x1x256xf32>
    tpu.vector_store %arg10[%c0_28, %c0_29, %c0_30], %47 {strides = array<i32>} : memref<1x1x256xf32, #tpu.memory_space<vmem>>, vector<1x1x256xf32>,
    return
  }
  func.func @transform_0(%arg0: i32) -> (i32, i32) {
    %c0_i32 = arith.constant 0 : i32
    %c0_i32_0 = arith.constant 0 : i32
    return %arg0, %c0_i32 : i32, i32
  }
  func.func @transform_1(%arg0: i32) -> (i32, i32) {
    %c0_i32 = arith.constant 0 : i32
    %c0_i32_0 = arith.constant 0 : i32
    %c0_i32_1 = arith.constant 0 : i32
    return %c0_i32, %c0_i32_0 : i32, i32
  }
  func.func @transform_2(%arg0: i32) -> (i32, i32) {
    %c0_i32 = arith.constant 0 : i32
    %c0_i32_0 = arith.constant 0 : i32
    %c0_i32_1 = arith.constant 0 : i32
    return %c0_i32, %c0_i32_0 : i32, i32
  }
  func.func @transform_3(%arg0: i32) -> (i32, i32) {
    %c0_i32 = arith.constant 0 : i32
    %c0_i32_0 = arith.constant 0 : i32
    %c0_i32_1 = arith.constant 0 : i32
    return %c0_i32, %c0_i32_0 : i32, i32
  }
  func.func @transform_4(%arg0: i32) -> (i32, i32) {
    %c0_i32 = arith.constant 0 : i32
    %c0_i32_0 = arith.constant 0 : i32
    %c0_i32_1 = arith.constant 0 : i32
    return %c0_i32, %c0_i32_0 : i32, i32
  }
  func.func @transform_5(%arg0: i32) -> (i32, i32) {
    %c0_i32 = arith.constant 0 : i32
    %c0_i32_0 = arith.constant 0 : i32
    %c0_i32_1 = arith.constant 0 : i32
    return %c0_i32, %c0_i32_0 : i32, i32
  }
  func.func @transform_6(%arg0: i32) -> (i32, i32) {
    %c0_i32 = arith.constant 0 : i32
    %c0_i32_0 = arith.constant 0 : i32
    %c0_i32_1 = arith.constant 0 : i32
    return %c0_i32, %c0_i32_0 : i32, i32
  }
  func.func @transform_7(%arg0: i32) -> (i32, i32) {
    %c0_i32 = arith.constant 0 : i32
    %c0_i32_0 = arith.constant 0 : i32
    %c0_i32_1 = arith.constant 0 : i32
    return %c0_i32, %c0_i32_0 : i32, i32
  }
  func.func @transform_8(%arg0: i32) -> (i32, i32) {
    %c0_i32 = arith.constant 0 : i32
    %c0_i32_0 = arith.constant 0 : i32
    %c0_i32_1 = arith.constant 0 : i32
    return %c0_i32, %c0_i32_0 : i32, i32
  }
  func.func @transform_9(%arg0: i32) -> (i32, i32, i32) {
    %c0_i32 = arith.constant 0 : i32
    %c0_i32_0 = arith.constant 0 : i32
    %c0_i32_1 = arith.constant 0 : i32
    return %arg0, %c0_i32, %c0_i32_0 : i32, i32, i32
  }
}

</mosaic_0001>

<llo_original>
// kernel: discriminator_forward.1
$region0: #{discriminator_forward.1}
  #allocation0 [shape = 'u32[]', space=smem, size = 0x4, offset = 0x4, fixed_abs, tag = 'smem constant byte address 0x4 - core index']
  #allocation1 [shape = 'u32[72,128]{1,0:T(1,128)}', space=vmem, size = 0x9000, scoped, tag = 'internal scratch']
  #allocation2 [shape = 'f32[1,1]{1,0:T(1,128)S(6)}', space=smem, size = 0x200, scoped, tag = 'scoped memory for discriminator_forward.1']
  %s0 = inlined_call_operand.vmem [shape: f32[256,64], index: 0, kind: input, shape index: {}]
  %s1 = inlined_call_operand.vmem [shape: bf16[64,512], index: 1, kind: input, shape index: {}]
  %s2 = inlined_call_operand.vmem [shape: f32[1,512], index: 2, kind: input, shape index: {}]
  %s3 = inlined_call_operand.vmem [shape: bf16[512,256], index: 3, kind: input, shape index: {}]
  %s4 = inlined_call_operand.vmem [shape: f32[1,256], index: 4, kind: input, shape index: {}]
  %s5 = inlined_call_operand.vmem [shape: bf16[256,128], index: 5, kind: input, shape index: {}]
  %s6 = inlined_call_operand.vmem [shape: f32[1,128], index: 6, kind: input, shape index: {}]
  %s7 = inlined_call_operand.vmem [shape: bf16[8,128], index: 7, kind: input, shape index: {}]
  %s8 = inlined_call_operand.<no memory space> [shape: f32[1,1], index: 8, kind: input, shape index: {}]
  %s9 = inlined_call_operand.vmem [shape: f32[1,1,256], index: 9, kind: output, shape index: {}]
  %s10 = sld [smem:[#allocation0]]
  $region46: #{discriminator_forward.1} parent=0
    _
  %s12 = ssub.s32 1, %s10
  %s13 = scalar_select 0, %s12, %s10
  %14 = sst [smem:[#allocation2]] %s8
  // Predicated region
  $region2: #{discriminator_forward.1} parent=0 // pred_check
    _
  $region3: #{discriminator_forward.1} parent=0 // pred_check_branch
    %16 = sbr.rel (0) target = $region5
  $region4: #{discriminator_forward.1} parent=0 // pred_region
    _
  $region5: #{discriminator_forward.1} parent=0 // pred_fallthru
    _
  // Predicated region
  $region6: #{discriminator_forward.1} parent=0 // pred_check
    _
  $region7: #{discriminator_forward.1} parent=0 // pred_check_branch
    %18 = sbr.rel (0) target = $region9
  $region8: #{discriminator_forward.1} parent=0 // pred_region
    _
  $region9: #{discriminator_forward.1} parent=0 // pred_fallthru
    _
  // Predicated region
  $region10: #{discriminator_forward.1} parent=0 // pred_check
    _
  $region11: #{discriminator_forward.1} parent=0 // pred_check_branch
    %20 = sbr.rel (0) target = $region13
  $region12: #{discriminator_forward.1} parent=0 // pred_region
    _
  $region13: #{discriminator_forward.1} parent=0 // pred_fallthru
    _
  // Predicated region
  $region14: #{discriminator_forward.1} parent=0 // pred_check
    _
  $region15: #{discriminator_forward.1} parent=0 // pred_check_branch
    %22 = sbr.rel (0) target = $region17
  $region16: #{discriminator_forward.1} parent=0 // pred_region
    _
  $region17: #{discriminator_forward.1} parent=0 // pred_fallthru
    _
  // Predicated region
  $region18: #{discriminator_forward.1} parent=0 // pred_check
    _
  $region19: #{discriminator_forward.1} parent=0 // pred_check_branch
    %24 = sbr.rel (0) target = $region21
  $region20: #{discriminator_forward.1} parent=0 // pred_region
    _
  $region21: #{discriminator_forward.1} parent=0 // pred_fallthru
    _
  // Predicated region
  $region22: #{discriminator_forward.1} parent=0 // pred_check
    _
  $region23: #{discriminator_forward.1} parent=0 // pred_check_branch
    %26 = sbr.rel (0) target = $region25
  $region24: #{discriminator_forward.1} parent=0 // pred_region
    _
  $region25: #{discriminator_forward.1} parent=0 // pred_fallthru
    _
  // Predicated region
  $region26: #{discriminator_forward.1} parent=0 // pred_check
    _
  $region27: #{discriminator_forward.1} parent=0 // pred_check_branch
    %28 = sbr.rel (0) target = $region29
  $region28: #{discriminator_forward.1} parent=0 // pred_region
    _
  $region29: #{discriminator_forward.1} parent=0 // pred_fallthru
    _
  // Predicated region
  $region30: #{discriminator_forward.1} parent=0 // pred_check
    _
  $region31: #{discriminator_forward.1} parent=0 // pred_check_branch
    %30 = sbr.rel (0) target = $region33
  $region32: #{discriminator_forward.1} parent=0 // pred_region
    _
  $region33: #{discriminator_forward.1} parent=0 // pred_fallthru
    _
  // Predicated region
  $region34: #{discriminator_forward.1} parent=0 // pred_check
    _
  $region35: #{discriminator_forward.1} parent=0 // pred_check_branch
    %32 = sbr.rel (0) target = $region37
  $region36: #{discriminator_forward.1} parent=0 // pred_region
    _
  $region37: #{discriminator_forward.1} parent=0 // pred_fallthru
    _
  %v34 = vld [vmem:[%s0] sm:$0xff]
  %v35 = vld [vmem:[%s0 + $0x8] sm:$0xff]
  %v36 = vld [vmem:[%s0 + $0x10] sm:$0xff]
  %v37 = vld [vmem:[%s0 + $0x18] sm:$0xff]
  %v38 = vld [vmem:[%s0 + $0x20] sm:$0xff]
  %v39 = vld [vmem:[%s0 + $0x28] sm:$0xff]
  %v40 = vld [vmem:[%s0 + $0x30] sm:$0xff]
  %v41 = vld [vmem:[%s0 + $0x38] sm:$0xff]
  %v42 = vld [vmem:[%s0 + $0x40] sm:$0xff]
  %v43 = vld [vmem:[%s0 + $0x48] sm:$0xff]
  %v44 = vld [vmem:[%s0 + $0x50] sm:$0xff]
  %v45 = vld [vmem:[%s0 + $0x58] sm:$0xff]
  %v46 = vld [vmem:[%s0 + $0x60] sm:$0xff]
  %v47 = vld [vmem:[%s0 + $0x68] sm:$0xff]
  %v48 = vld [vmem:[%s0 + $0x70] sm:$0xff]
  %v49 = vld [vmem:[%s0 + $0x78] sm:$0xff]
  %v50 = vld [vmem:[%s0 + $0x80] sm:$0xff]
  %v51 = vld [vmem:[%s0 + $0x88] sm:$0xff]
  %v52 = vld [vmem:[%s0 + $0x90] sm:$0xff]
  %v53 = vld [vmem:[%s0 + $0x98] sm:$0xff]
  %v54 = vld [vmem:[%s0 + $0xa0] sm:$0xff]
  %v55 = vld [vmem:[%s0 + $0xa8] sm:$0xff]
  %v56 = vld [vmem:[%s0 + $0xb0] sm:$0xff]
  %v57 = vld [vmem:[%s0 + $0xb8] sm:$0xff]
  %v58 = vld [vmem:[%s0 + $0xc0] sm:$0xff]
  %v59 = vld [vmem:[%s0 + $0xc8] sm:$0xff]
  %v60 = vld [vmem:[%s0 + $0xd0] sm:$0xff]
  %v61 = vld [vmem:[%s0 + $0xd8] sm:$0xff]
  %v62 = vld [vmem:[%s0 + $0xe0] sm:$0xff]
  %v63 = vld [vmem:[%s0 + $0xe8] sm:$0xff]
  %v64 = vld [vmem:[%s0 + $0xf0] sm:$0xff]
  %v65 = vld [vmem:[%s0 + $0xf8] sm:$0xff]
  %v66 = vpack.c.bf16 %v35, %v34
  %v67 = vpack.c.bf16 %v37, %v36
  %v68 = vpack.c.bf16 %v39, %v38
  %v69 = vpack.c.bf16 %v41, %v40
  %v70 = vpack.c.bf16 %v43, %v42
  %v71 = vpack.c.bf16 %v45, %v44
  %v72 = vpack.c.bf16 %v47, %v46
  %v73 = vpack.c.bf16 %v49, %v48
  %v74 = vpack.c.bf16 %v51, %v50
  %v75 = vpack.c.bf16 %v53, %v52
  %v76 = vpack.c.bf16 %v55, %v54
  %v77 = vpack.c.bf16 %v57, %v56
  %v78 = vpack.c.bf16 %v59, %v58
  %v79 = vpack.c.bf16 %v61, %v60
  %v80 = vpack.c.bf16 %v63, %v62
  %v81 = vpack.c.bf16 %v65, %v64
  %v82 = vld [vmem:[%s1] sm:$0xff]
  %v83 = vld [vmem:[%s1 + $0x8] sm:$0xff]
  %v84 = vld [vmem:[%s1 + $0x10] sm:$0xff]
  %v85 = vld [vmem:[%s1 + $0x18] sm:$0xff]
  %v86 = vld [vmem:[%s1 + $0x20] sm:$0xff]
  %v87 = vld [vmem:[%s1 + $0x28] sm:$0xff]
  %v88 = vld [vmem:[%s1 + $0x30] sm:$0xff]
  %v89 = vld [vmem:[%s1 + $0x38] sm:$0xff]
  %v90 = vld [vmem:[%s1 + $0x40] sm:$0xff]
  %v91 = vld [vmem:[%s1 + $0x48] sm:$0xff]
  %v92 = vld [vmem:[%s1 + $0x50] sm:$0xff]
  %v93 = vld [vmem:[%s1 + $0x58] sm:$0xff]
  %v94 = vld [vmem:[%s1 + $0x60] sm:$0xff]
  %v95 = vld [vmem:[%s1 + $0x68] sm:$0xff]
  %v96 = vld [vmem:[%s1 + $0x70] sm:$0xff]
  %v97 = vld [vmem:[%s1 + $0x78] sm:$0xff]
  %v98 = vld [vmem:[%s2] sm:$0xf]
  %v100 = vperm.slane %v98, 0
  %v101 = vperm.slane %v98, 1
  %v102 = vperm.slane %v98, 2
  %v103 = vperm.slane %v98, 3
  %v124 = vunpack.c.l.b16 %v82
  %v125 = vunpack.c.h.b16 %v82
  %v126 = vunpack.c.l.b16 %v83
  %v127 = vunpack.c.h.b16 %v83
  %v128 = vunpack.c.l.b16 %v84
  %v129 = vunpack.c.h.b16 %v84
  %v130 = vunpack.c.l.b16 %v85
  %v131 = vunpack.c.h.b16 %v85
  %v132 = vunpack.c.l.b16 %v86
  %v133 = vunpack.c.h.b16 %v86
  %v134 = vunpack.c.l.b16 %v87
  %v135 = vunpack.c.h.b16 %v87
  %v136 = vunpack.c.l.b16 %v88
  %v137 = vunpack.c.h.b16 %v88
  %v138 = vunpack.c.l.b16 %v89
  %v139 = vunpack.c.h.b16 %v89
  %v140 = vunpack.c.l.b16 %v90
  %v141 = vunpack.c.h.b16 %v90
  %v142 = vunpack.c.l.b16 %v91
  %v143 = vunpack.c.h.b16 %v91
  %v144 = vunpack.c.l.b16 %v92
  %v145 = vunpack.c.h.b16 %v92
  %v146 = vunpack.c.l.b16 %v93
  %v147 = vunpack.c.h.b16 %v93
  %v148 = vunpack.c.l.b16 %v94
  %v149 = vunpack.c.h.b16 %v94
  %v150 = vunpack.c.l.b16 %v95
  %v151 = vunpack.c.h.b16 %v95
  %v152 = vunpack.c.l.b16 %v96
  %v153 = vunpack.c.h.b16 %v96
  %v154 = vunpack.c.l.b16 %v97
  %v155 = vunpack.c.h.b16 %v97
  %v156 = vpack.c.b16 %v128, %v124
  %v157 = vpack.c.b16 %v129, %v125
  %v158 = vpack.c.b16 %v130, %v126
  %v159 = vpack.c.b16 %v131, %v127
  %v160 = vpack.c.b16 %v136, %v132
  %v161 = vpack.c.b16 %v137, %v133
  %v162 = vpack.c.b16 %v138, %v134
  %v163 = vpack.c.b16 %v139, %v135
  %v164 = vpack.c.b16 %v144, %v140
  %v165 = vpack.c.b16 %v145, %v141
  %v166 = vpack.c.b16 %v146, %v142
  %v167 = vpack.c.b16 %v147, %v143
  %v168 = vpack.c.b16 %v152, %v148
  %v169 = vpack.c.b16 %v153, %v149
  %v170 = vpack.c.b16 %v154, %v150
  %v171 = vpack.c.b16 %v155, %v151
  %vm188 = vcmask 523264
  %v190 = vsel %vm188, %v66, 0
  %v193 = vsel %vm188, %v67, 0
  %v196 = vsel %vm188, %v68, 0
  %v199 = vsel %vm188, %v69, 0
  %v202 = vsel %vm188, %v70, 0
  %v205 = vsel %vm188, %v71, 0
  %v208 = vsel %vm188, %v72, 0
  %v211 = vsel %vm188, %v73, 0
  %v214 = vsel %vm188, %v74, 0
  %v217 = vsel %vm188, %v75, 0
  %v220 = vsel %vm188, %v76, 0
  %v223 = vsel %vm188, %v77, 0
  %v226 = vsel %vm188, %v78, 0
  %v229 = vsel %vm188, %v79, 0
  %v232 = vsel %vm188, %v80, 0
  %v235 = vsel %vm188, %v81, 0
  %237 = vmatpush.bf16.msra.mxu0 0
  %238 = vmatpush.bf16.msra.mxu0 0
  %239 = vmatpush.bf16.msra.mxu0 0
  %240 = vmatpush.bf16.msra.mxu0 0
  %241 = vmatpush.bf16.msra.mxu0 %v168
  %242 = vmatpush.bf16.msra.mxu0 %v164
  %243 = vmatpush.bf16.msra.mxu0 %v160
  %244 = vmatpush.bf16.msra.mxu0 %v156
  %245 = vmatmul.bf16.gmra.mxu0 %v190
  %v246 = vpop.f32.mrf.mxu0
  %v247 = vadd.f32 %v100, %v246
  %v248 = vpop.f32.mrf.mxu0
  %v249 = vadd.f32 %v100, %v248
  %250 = vmatmul.bf16.gmra.mxu0 %v193
  %v251 = vpop.f32.mrf.mxu0
  %v252 = vadd.f32 %v100, %v251
  %v253 = vpop.f32.mrf.mxu0
  %v254 = vadd.f32 %v100, %v253
  %255 = vmatmul.bf16.gmra.mxu0 %v196
  %v256 = vpop.f32.mrf.mxu0
  %v257 = vadd.f32 %v100, %v256
  %v258 = vpop.f32.mrf.mxu0
  %v259 = vadd.f32 %v100, %v258
  %260 = vmatmul.bf16.gmra.mxu0 %v199
  %v261 = vpop.f32.mrf.mxu0
  %v262 = vadd.f32 %v100, %v261
  %v263 = vpop.f32.mrf.mxu0
  %v264 = vadd.f32 %v100, %v263
  %265 = vmatmul.bf16.gmra.mxu0 %v202
  %v266 = vpop.f32.mrf.mxu0
  %v267 = vadd.f32 %v100, %v266
  %v268 = vpop.f32.mrf.mxu0
  %v269 = vadd.f32 %v100, %v268
  %270 = vmatmul.bf16.gmra.mxu0 %v205
  %v271 = vpop.f32.mrf.mxu0
  %v272 = vadd.f32 %v100, %v271
  %v273 = vpop.f32.mrf.mxu0
  %v274 = vadd.f32 %v100, %v273
  %275 = vmatmul.bf16.gmra.mxu0 %v208
  %v276 = vpop.f32.mrf.mxu0
  %v277 = vadd.f32 %v100, %v276
  %v278 = vpop.f32.mrf.mxu0
  %v279 = vadd.f32 %v100, %v278
  %280 = vmatmul.bf16.gmra.mxu0 %v211
  %v281 = vpop.f32.mrf.mxu0
  %v282 = vadd.f32 %v100, %v281
  %v283 = vpop.f32.mrf.mxu0
  %v284 = vadd.f32 %v100, %v283
  %285 = vmatmul.bf16.gmra.mxu0 %v214
  %v286 = vpop.f32.mrf.mxu0
  %v287 = vadd.f32 %v100, %v286
  %v288 = vpop.f32.mrf.mxu0
  %v289 = vadd.f32 %v100, %v288
  %290 = vmatmul.bf16.gmra.mxu0 %v217
  %v291 = vpop.f32.mrf.mxu0
  %v292 = vadd.f32 %v100, %v291
  %v293 = vpop.f32.mrf.mxu0
  %v294 = vadd.f32 %v100, %v293
  %295 = vmatmul.bf16.gmra.mxu0 %v220
  %v296 = vpop.f32.mrf.mxu0
  %v297 = vadd.f32 %v100, %v296
  %v298 = vpop.f32.mrf.mxu0
  %v299 = vadd.f32 %v100, %v298
  %300 = vmatmul.bf16.gmra.mxu0 %v223
  %v301 = vpop.f32.mrf.mxu0
  %v302 = vadd.f32 %v100, %v301
  %v303 = vpop.f32.mrf.mxu0
  %v304 = vadd.f32 %v100, %v303
  %305 = vmatmul.bf16.gmra.mxu0 %v226
  %v306 = vpop.f32.mrf.mxu0
  %v307 = vadd.f32 %v100, %v306
  %v308 = vpop.f32.mrf.mxu0
  %v309 = vadd.f32 %v100, %v308
  %310 = vmatmul.bf16.gmra.mxu0 %v229
  %v311 = vpop.f32.mrf.mxu0
  %v312 = vadd.f32 %v100, %v311
  %v313 = vpop.f32.mrf.mxu0
  %v314 = vadd.f32 %v100, %v313
  %315 = vmatmul.bf16.gmra.mxu0 %v232
  %v316 = vpop.f32.mrf.mxu0
  %v317 = vadd.f32 %v100, %v316
  %v318 = vpop.f32.mrf.mxu0
  %v319 = vadd.f32 %v100, %v318
  %320 = vmatmul.bf16.gmra.mxu0 %v235
  %v321 = vpop.f32.mrf.mxu0
  %v322 = vadd.f32 %v100, %v321
  %v323 = vpop.f32.mrf.mxu0
  %v324 = vadd.f32 %v100, %v323
  %325 = vdwg.mxu0
  %326 = vmatpush.bf16.msra.mxu0 0
  %327 = vmatpush.bf16.msra.mxu0 0
  %328 = vmatpush.bf16.msra.mxu0 0
  %329 = vmatpush.bf16.msra.mxu0 0
  %330 = vmatpush.bf16.msra.mxu0 %v169
  %331 = vmatpush.bf16.msra.mxu0 %v165
  %332 = vmatpush.bf16.msra.mxu0 %v161
  %333 = vmatpush.bf16.msra.mxu0 %v157
  %334 = vmatmul.bf16.gmra.mxu0 %v190
  %v335 = vpop.f32.mrf.mxu0
  %v336 = vadd.f32 %v101, %v335
  %v337 = vpop.f32.mrf.mxu0
  %v338 = vadd.f32 %v101, %v337
  %339 = vmatmul.bf16.gmra.mxu0 %v193
  %v340 = vpop.f32.mrf.mxu0
  %v341 = vadd.f32 %v101, %v340
  %v342 = vpop.f32.mrf.mxu0
  %v343 = vadd.f32 %v101, %v342
  %344 = vmatmul.bf16.gmra.mxu0 %v196
  %v345 = vpop.f32.mrf.mxu0
  %v346 = vadd.f32 %v101, %v345
  %v347 = vpop.f32.mrf.mxu0
  %v348 = vadd.f32 %v101, %v347
  %349 = vmatmul.bf16.gmra.mxu0 %v199
  %v350 = vpop.f32.mrf.mxu0
  %v351 = vadd.f32 %v101, %v350
  %v352 = vpop.f32.mrf.mxu0
  %v353 = vadd.f32 %v101, %v352
  %354 = vmatmul.bf16.gmra.mxu0 %v202
  %v355 = vpop.f32.mrf.mxu0
  %v356 = vadd.f32 %v101, %v355
  %v357 = vpop.f32.mrf.mxu0
  %v358 = vadd.f32 %v101, %v357
  %359 = vmatmul.bf16.gmra.mxu0 %v205
  %v360 = vpop.f32.mrf.mxu0
  %v361 = vadd.f32 %v101, %v360
  %v362 = vpop.f32.mrf.mxu0
  %v363 = vadd.f32 %v101, %v362
  %364 = vmatmul.bf16.gmra.mxu0 %v208
  %v365 = vpop.f32.mrf.mxu0
  %v366 = vadd.f32 %v101, %v365
  %v367 = vpop.f32.mrf.mxu0
  %v368 = vadd.f32 %v101, %v367
  %369 = vmatmul.bf16.gmra.mxu0 %v211
  %v370 = vpop.f32.mrf.mxu0
  %v371 = vadd.f32 %v101, %v370
  %v372 = vpop.f32.mrf.mxu0
  %v373 = vadd.f32 %v101, %v372
  %374 = vmatmul.bf16.gmra.mxu0 %v214
  %v375 = vpop.f32.mrf.mxu0
  %v376 = vadd.f32 %v101, %v375
  %v377 = vpop.f32.mrf.mxu0
  %v378 = vadd.f32 %v101, %v377
  %379 = vmatmul.bf16.gmra.mxu0 %v217
  %v380 = vpop.f32.mrf.mxu0
  %v381 = vadd.f32 %v101, %v380
  %v382 = vpop.f32.mrf.mxu0
  %v383 = vadd.f32 %v101, %v382
  %384 = vmatmul.bf16.gmra.mxu0 %v220
  %v385 = vpop.f32.mrf.mxu0
  %v386 = vadd.f32 %v101, %v385
  %v387 = vpop.f32.mrf.mxu0
  %v388 = vadd.f32 %v101, %v387
  %389 = vmatmul.bf16.gmra.mxu0 %v223
  %v390 = vpop.f32.mrf.mxu0
  %v391 = vadd.f32 %v101, %v390
  %v392 = vpop.f32.mrf.mxu0
  %v393 = vadd.f32 %v101, %v392
  %394 = vmatmul.bf16.gmra.mxu0 %v226
  %v395 = vpop.f32.mrf.mxu0
  %v396 = vadd.f32 %v101, %v395
  %v397 = vpop.f32.mrf.mxu0
  %v398 = vadd.f32 %v101, %v397
  %399 = vmatmul.bf16.gmra.mxu0 %v229
  %v400 = vpop.f32.mrf.mxu0
  %v401 = vadd.f32 %v101, %v400
  %v402 = vpop.f32.mrf.mxu0
  %v403 = vadd.f32 %v101, %v402
  %404 = vmatmul.bf16.gmra.mxu0 %v232
  %v405 = vpop.f32.mrf.mxu0
  %v406 = vadd.f32 %v101, %v405
  %v407 = vpop.f32.mrf.mxu0
  %v408 = vadd.f32 %v101, %v407
  %409 = vmatmul.bf16.gmra.mxu0 %v235
  %v410 = vpop.f32.mrf.mxu0
  %v411 = vadd.f32 %v101, %v410
  %v412 = vpop.f32.mrf.mxu0
  %v413 = vadd.f32 %v101, %v412
  %414 = vdwg.mxu0
  %415 = vmatpush.bf16.msra.mxu0 0
  %416 = vmatpush.bf16.msra.mxu0 0
  %417 = vmatpush.bf16.msra.mxu0 0
  %418 = vmatpush.bf16.msra.mxu0 0
  %419 = vmatpush.bf16.msra.mxu0 %v170
  %420 = vmatpush.bf16.msra.mxu0 %v166
  %421 = vmatpush.bf16.msra.mxu0 %v162
  %422 = vmatpush.bf16.msra.mxu0 %v158
  %423 = vmatmul.bf16.gmra.mxu0 %v190
  %v424 = vpop.f32.mrf.mxu0
  %v425 = vadd.f32 %v102, %v424
  %v426 = vpop.f32.mrf.mxu0
  %v427 = vadd.f32 %v102, %v426
  %428 = vmatmul.bf16.gmra.mxu0 %v193
  %v429 = vpop.f32.mrf.mxu0
  %v430 = vadd.f32 %v102, %v429
  %v431 = vpop.f32.mrf.mxu0
  %v432 = vadd.f32 %v102, %v431
  %433 = vmatmul.bf16.gmra.mxu0 %v196
  %v434 = vpop.f32.mrf.mxu0
  %v435 = vadd.f32 %v102, %v434
  %v436 = vpop.f32.mrf.mxu0
  %v437 = vadd.f32 %v102, %v436
  %438 = vmatmul.bf16.gmra.mxu0 %v199
  %v439 = vpop.f32.mrf.mxu0
  %v440 = vadd.f32 %v102, %v439
  %v441 = vpop.f32.mrf.mxu0
  %v442 = vadd.f32 %v102, %v441
  %443 = vmatmul.bf16.gmra.mxu0 %v202
  %v444 = vpop.f32.mrf.mxu0
  %v445 = vadd.f32 %v102, %v444
  %v446 = vpop.f32.mrf.mxu0
  %v447 = vadd.f32 %v102, %v446
  %448 = vmatmul.bf16.gmra.mxu0 %v205
  %v449 = vpop.f32.mrf.mxu0
  %v450 = vadd.f32 %v102, %v449
  %v451 = vpop.f32.mrf.mxu0
  %v452 = vadd.f32 %v102, %v451
  %453 = vmatmul.bf16.gmra.mxu0 %v208
  %v454 = vpop.f32.mrf.mxu0
  %v455 = vadd.f32 %v102, %v454
  %v456 = vpop.f32.mrf.mxu0
  %v457 = vadd.f32 %v102, %v456
  %458 = vmatmul.bf16.gmra.mxu0 %v211
  %v459 = vpop.f32.mrf.mxu0
  %v460 = vadd.f32 %v102, %v459
  %v461 = vpop.f32.mrf.mxu0
  %v462 = vadd.f32 %v102, %v461
  %463 = vmatmul.bf16.gmra.mxu0 %v214
  %v464 = vpop.f32.mrf.mxu0
  %v465 = vadd.f32 %v102, %v464
  %v466 = vpop.f32.mrf.mxu0
  %v467 = vadd.f32 %v102, %v466
  %468 = vmatmul.bf16.gmra.mxu0 %v217
  %v469 = vpop.f32.mrf.mxu0
  %v470 = vadd.f32 %v102, %v469
  %v471 = vpop.f32.mrf.mxu0
  %v472 = vadd.f32 %v102, %v471
  %473 = vmatmul.bf16.gmra.mxu0 %v220
  %v474 = vpop.f32.mrf.mxu0
  %v475 = vadd.f32 %v102, %v474
  %v476 = vpop.f32.mrf.mxu0
  %v477 = vadd.f32 %v102, %v476
  %478 = vmatmul.bf16.gmra.mxu0 %v223
  %v479 = vpop.f32.mrf.mxu0
  %v480 = vadd.f32 %v102, %v479
  %v481 = vpop.f32.mrf.mxu0
  %v482 = vadd.f32 %v102, %v481
  %483 = vmatmul.bf16.gmra.mxu0 %v226
  %v484 = vpop.f32.mrf.mxu0
  %v485 = vadd.f32 %v102, %v484
  %v486 = vpop.f32.mrf.mxu0
  %v487 = vadd.f32 %v102, %v486
  %488 = vmatmul.bf16.gmra.mxu0 %v229
  %v489 = vpop.f32.mrf.mxu0
  %v490 = vadd.f32 %v102, %v489
  %v491 = vpop.f32.mrf.mxu0
  %v492 = vadd.f32 %v102, %v491
  %493 = vmatmul.bf16.gmra.mxu0 %v232
  %v494 = vpop.f32.mrf.mxu0
  %v495 = vadd.f32 %v102, %v494
  %v496 = vpop.f32.mrf.mxu0
  %v497 = vadd.f32 %v102, %v496
  %498 = vmatmul.bf16.gmra.mxu0 %v235
  %v499 = vpop.f32.mrf.mxu0
  %v500 = vadd.f32 %v102, %v499
  %v501 = vpop.f32.mrf.mxu0
  %v502 = vadd.f32 %v102, %v501
  %503 = vdwg.mxu0
  %504 = vmatpush.bf16.msra.mxu0 0
  %505 = vmatpush.bf16.msra.mxu0 0
  %506 = vmatpush.bf16.msra.mxu0 0
  %507 = vmatpush.bf16.msra.mxu0 0
  %508 = vmatpush.bf16.msra.mxu0 %v171
  %509 = vmatpush.bf16.msra.mxu0 %v167
  %510 = vmatpush.bf16.msra.mxu0 %v163
  %511 = vmatpush.bf16.msra.mxu0 %v159
  %512 = vmatmul.bf16.gmra.mxu0 %v190
  %v513 = vpop.f32.mrf.mxu0
  %v514 = vadd.f32 %v103, %v513
  %v515 = vpop.f32.mrf.mxu0
  %v516 = vadd.f32 %v103, %v515
  %517 = vmatmul.bf16.gmra.mxu0 %v193
  %v518 = vpop.f32.mrf.mxu0
  %v519 = vadd.f32 %v103, %v518
  %v520 = vpop.f32.mrf.mxu0
  %v521 = vadd.f32 %v103, %v520
  %522 = vmatmul.bf16.gmra.mxu0 %v196
  %v523 = vpop.f32.mrf.mxu0
  %v524 = vadd.f32 %v103, %v523
  %v525 = vpop.f32.mrf.mxu0
  %v526 = vadd.f32 %v103, %v525
  %527 = vmatmul.bf16.gmra.mxu0 %v199
  %v528 = vpop.f32.mrf.mxu0
  %v529 = vadd.f32 %v103, %v528
  %v530 = vpop.f32.mrf.mxu0
  %v531 = vadd.f32 %v103, %v530
  %532 = vmatmul.bf16.gmra.mxu0 %v202
  %v533 = vpop.f32.mrf.mxu0
  %v534 = vadd.f32 %v103, %v533
  %v535 = vpop.f32.mrf.mxu0
  %v536 = vadd.f32 %v103, %v535
  %537 = vmatmul.bf16.gmra.mxu0 %v205
  %v538 = vpop.f32.mrf.mxu0
  %v539 = vadd.f32 %v103, %v538
  %v540 = vpop.f32.mrf.mxu0
  %v541 = vadd.f32 %v103, %v540
  %542 = vmatmul.bf16.gmra.mxu0 %v208
  %v543 = vpop.f32.mrf.mxu0
  %v544 = vadd.f32 %v103, %v543
  %v545 = vpop.f32.mrf.mxu0
  %v546 = vadd.f32 %v103, %v545
  %547 = vmatmul.bf16.gmra.mxu0 %v211
  %v548 = vpop.f32.mrf.mxu0
  %v549 = vadd.f32 %v103, %v548
  %v550 = vpop.f32.mrf.mxu0
  %v551 = vadd.f32 %v103, %v550
  %552 = vmatmul.bf16.gmra.mxu0 %v214
  %v553 = vpop.f32.mrf.mxu0
  %v554 = vadd.f32 %v103, %v553
  %v555 = vpop.f32.mrf.mxu0
  %v556 = vadd.f32 %v103, %v555
  %557 = vmatmul.bf16.gmra.mxu0 %v217
  %v558 = vpop.f32.mrf.mxu0
  %v559 = vadd.f32 %v103, %v558
  %v560 = vpop.f32.mrf.mxu0
  %v561 = vadd.f32 %v103, %v560
  %562 = vmatmul.bf16.gmra.mxu0 %v220
  %v563 = vpop.f32.mrf.mxu0
  %v564 = vadd.f32 %v103, %v563
  %v565 = vpop.f32.mrf.mxu0
  %v566 = vadd.f32 %v103, %v565
  %567 = vmatmul.bf16.gmra.mxu0 %v223
  %v568 = vpop.f32.mrf.mxu0
  %v569 = vadd.f32 %v103, %v568
  %v570 = vpop.f32.mrf.mxu0
  %v571 = vadd.f32 %v103, %v570
  %572 = vmatmul.bf16.gmra.mxu0 %v226
  %v573 = vpop.f32.mrf.mxu0
  %v574 = vadd.f32 %v103, %v573
  %v575 = vpop.f32.mrf.mxu0
  %v576 = vadd.f32 %v103, %v575
  %577 = vmatmul.bf16.gmra.mxu0 %v229
  %v578 = vpop.f32.mrf.mxu0
  %v579 = vadd.f32 %v103, %v578
  %v580 = vpop.f32.mrf.mxu0
  %v581 = vadd.f32 %v103, %v580
  %582 = vmatmul.bf16.gmra.mxu0 %v232
  %v583 = vpop.f32.mrf.mxu0
  %v584 = vadd.f32 %v103, %v583
  %v585 = vpop.f32.mrf.mxu0
  %v586 = vadd.f32 %v103, %v585
  %587 = vmatmul.bf16.gmra.mxu0 %v235
  %v588 = vpop.f32.mrf.mxu0
  %v589 = vadd.f32 %v103, %v588
  %v590 = vpop.f32.mrf.mxu0
  %v591 = vadd.f32 %v103, %v590
  %592 = vdwg.mxu0
  %vm593 = vcmp.gt.f32.partialorder %v247, 0.0
  %vm594 = vcmp.gt.f32.partialorder %v336, 0.0
  %vm595 = vcmp.gt.f32.partialorder %v425, 0.0
  %vm596 = vcmp.gt.f32.partialorder %v514, 0.0
  %vm597 = vcmp.gt.f32.partialorder %v249, 0.0
  %vm598 = vcmp.gt.f32.partialorder %v338, 0.0
  %vm599 = vcmp.gt.f32.partialorder %v427, 0.0
  %vm600 = vcmp.gt.f32.partialorder %v516, 0.0
  %vm601 = vcmp.gt.f32.partialorder %v252, 0.0
  %vm602 = vcmp.gt.f32.partialorder %v341, 0.0
  %vm603 = vcmp.gt.f32.partialorder %v430, 0.0
  %vm604 = vcmp.gt.f32.partialorder %v519, 0.0
  %vm605 = vcmp.gt.f32.partialorder %v254, 0.0
  %vm606 = vcmp.gt.f32.partialorder %v343, 0.0
  %vm607 = vcmp.gt.f32.partialorder %v432, 0.0
  %vm608 = vcmp.gt.f32.partialorder %v521, 0.0
  %vm609 = vcmp.gt.f32.partialorder %v257, 0.0
  %vm610 = vcmp.gt.f32.partialorder %v346, 0.0
  %vm611 = vcmp.gt.f32.partialorder %v435, 0.0
  %vm612 = vcmp.gt.f32.partialorder %v524, 0.0
  %vm613 = vcmp.gt.f32.partialorder %v259, 0.0
  %vm614 = vcmp.gt.f32.partialorder %v348, 0.0
  %vm615 = vcmp.gt.f32.partialorder %v437, 0.0
  %vm616 = vcmp.gt.f32.partialorder %v526, 0.0
  %vm617 = vcmp.gt.f32.partialorder %v262, 0.0
  %vm618 = vcmp.gt.f32.partialorder %v351, 0.0
  %vm619 = vcmp.gt.f32.partialorder %v440, 0.0
  %vm620 = vcmp.gt.f32.partialorder %v529, 0.0
  %vm621 = vcmp.gt.f32.partialorder %v264, 0.0
  %vm622 = vcmp.gt.f32.partialorder %v353, 0.0
  %vm623 = vcmp.gt.f32.partialorder %v442, 0.0
  %vm624 = vcmp.gt.f32.partialorder %v531, 0.0
  %vm625 = vcmp.gt.f32.partialorder %v267, 0.0
  %vm626 = vcmp.gt.f32.partialorder %v356, 0.0
  %vm627 = vcmp.gt.f32.partialorder %v445, 0.0
  %vm628 = vcmp.gt.f32.partialorder %v534, 0.0
  %vm629 = vcmp.gt.f32.partialorder %v269, 0.0
  %vm630 = vcmp.gt.f32.partialorder %v358, 0.0
  %vm631 = vcmp.gt.f32.partialorder %v447, 0.0
  %vm632 = vcmp.gt.f32.partialorder %v536, 0.0
  %vm633 = vcmp.gt.f32.partialorder %v272, 0.0
  %vm634 = vcmp.gt.f32.partialorder %v361, 0.0
  %vm635 = vcmp.gt.f32.partialorder %v450, 0.0
  %vm636 = vcmp.gt.f32.partialorder %v539, 0.0
  %vm637 = vcmp.gt.f32.partialorder %v274, 0.0
  %vm638 = vcmp.gt.f32.partialorder %v363, 0.0
  %vm639 = vcmp.gt.f32.partialorder %v452, 0.0
  %vm640 = vcmp.gt.f32.partialorder %v541, 0.0
  %vm641 = vcmp.gt.f32.partialorder %v277, 0.0
  %vm642 = vcmp.gt.f32.partialorder %v366, 0.0
  %vm643 = vcmp.gt.f32.partialorder %v455, 0.0
  %vm644 = vcmp.gt.f32.partialorder %v544, 0.0
  %vm645 = vcmp.gt.f32.partialorder %v279, 0.0
  %vm646 = vcmp.gt.f32.partialorder %v368, 0.0
  %vm647 = vcmp.gt.f32.partialorder %v457, 0.0
  %vm648 = vcmp.gt.f32.partialorder %v546, 0.0
  %vm649 = vcmp.gt.f32.partialorder %v282, 0.0
  %vm650 = vcmp.gt.f32.partialorder %v371, 0.0
  %vm651 = vcmp.gt.f32.partialorder %v460, 0.0
  %vm652 = vcmp.gt.f32.partialorder %v549, 0.0
  %vm653 = vcmp.gt.f32.partialorder %v284, 0.0
  %vm654 = vcmp.gt.f32.partialorder %v373, 0.0
  %vm655 = vcmp.gt.f32.partialorder %v462, 0.0
  %vm656 = vcmp.gt.f32.partialorder %v551, 0.0
  %vm657 = vcmp.gt.f32.partialorder %v287, 0.0
  %vm658 = vcmp.gt.f32.partialorder %v376, 0.0
  %vm659 = vcmp.gt.f32.partialorder %v465, 0.0
  %vm660 = vcmp.gt.f32.partialorder %v554, 0.0
  %vm661 = vcmp.gt.f32.partialorder %v289, 0.0
  %vm662 = vcmp.gt.f32.partialorder %v378, 0.0
  %vm663 = vcmp.gt.f32.partialorder %v467, 0.0
  %vm664 = vcmp.gt.f32.partialorder %v556, 0.0
  %vm665 = vcmp.gt.f32.partialorder %v292, 0.0
  %vm666 = vcmp.gt.f32.partialorder %v381, 0.0
  %vm667 = vcmp.gt.f32.partialorder %v470, 0.0
  %vm668 = vcmp.gt.f32.partialorder %v559, 0.0
  %vm669 = vcmp.gt.f32.partialorder %v294, 0.0
  %vm670 = vcmp.gt.f32.partialorder %v383, 0.0
  %vm671 = vcmp.gt.f32.partialorder %v472, 0.0
  %vm672 = vcmp.gt.f32.partialorder %v561, 0.0
  %vm673 = vcmp.gt.f32.partialorder %v297, 0.0
  %vm674 = vcmp.gt.f32.partialorder %v386, 0.0
  %vm675 = vcmp.gt.f32.partialorder %v475, 0.0
  %vm676 = vcmp.gt.f32.partialorder %v564, 0.0
  %vm677 = vcmp.gt.f32.partialorder %v299, 0.0
  %vm678 = vcmp.gt.f32.partialorder %v388, 0.0
  %vm679 = vcmp.gt.f32.partialorder %v477, 0.0
  %vm680 = vcmp.gt.f32.partialorder %v566, 0.0
  %vm681 = vcmp.gt.f32.partialorder %v302, 0.0
  %vm682 = vcmp.gt.f32.partialorder %v391, 0.0
  %vm683 = vcmp.gt.f32.partialorder %v480, 0.0
  %vm684 = vcmp.gt.f32.partialorder %v569, 0.0
  %vm685 = vcmp.gt.f32.partialorder %v304, 0.0
  %vm686 = vcmp.gt.f32.partialorder %v393, 0.0
  %vm687 = vcmp.gt.f32.partialorder %v482, 0.0
  %vm688 = vcmp.gt.f32.partialorder %v571, 0.0
  %vm689 = vcmp.gt.f32.partialorder %v307, 0.0
  %vm690 = vcmp.gt.f32.partialorder %v396, 0.0
  %vm691 = vcmp.gt.f32.partialorder %v485, 0.0
  %vm692 = vcmp.gt.f32.partialorder %v574, 0.0
  %vm693 = vcmp.gt.f32.partialorder %v309, 0.0
  %vm694 = vcmp.gt.f32.partialorder %v398, 0.0
  %vm695 = vcmp.gt.f32.partialorder %v487, 0.0
  %vm696 = vcmp.gt.f32.partialorder %v576, 0.0
  %vm697 = vcmp.gt.f32.partialorder %v312, 0.0
  %vm698 = vcmp.gt.f32.partialorder %v401, 0.0
  %vm699 = vcmp.gt.f32.partialorder %v490, 0.0
  %vm700 = vcmp.gt.f32.partialorder %v579, 0.0
  %vm701 = vcmp.gt.f32.partialorder %v314, 0.0
  %vm702 = vcmp.gt.f32.partialorder %v403, 0.0
  %vm703 = vcmp.gt.f32.partialorder %v492, 0.0
  %vm704 = vcmp.gt.f32.partialorder %v581, 0.0
  %vm705 = vcmp.gt.f32.partialorder %v317, 0.0
  %vm706 = vcmp.gt.f32.partialorder %v406, 0.0
  %vm707 = vcmp.gt.f32.partialorder %v495, 0.0
  %vm708 = vcmp.gt.f32.partialorder %v584, 0.0
  %vm709 = vcmp.gt.f32.partialorder %v319, 0.0
  %vm710 = vcmp.gt.f32.partialorder %v408, 0.0
  %vm711 = vcmp.gt.f32.partialorder %v497, 0.0
  %vm712 = vcmp.gt.f32.partialorder %v586, 0.0
  %vm713 = vcmp.gt.f32.partialorder %v322, 0.0
  %vm714 = vcmp.gt.f32.partialorder %v411, 0.0
  %vm715 = vcmp.gt.f32.partialorder %v500, 0.0
  %vm716 = vcmp.gt.f32.partialorder %v589, 0.0
  %vm717 = vcmp.gt.f32.partialorder %v324, 0.0
  %vm718 = vcmp.gt.f32.partialorder %v413, 0.0
  %vm719 = vcmp.gt.f32.partialorder %v502, 0.0
  %vm720 = vcmp.gt.f32.partialorder %v591, 0.0
  %v721 = vmul.f32 %v247, 0.2
  %v722 = vmul.f32 %v336, 0.2
  %v723 = vmul.f32 %v425, 0.2
  %v724 = vmul.f32 %v514, 0.2
  %v725 = vmul.f32 %v249, 0.2
  %v726 = vmul.f32 %v338, 0.2
  %v727 = vmul.f32 %v427, 0.2
  %v728 = vmul.f32 %v516, 0.2
  %v729 = vmul.f32 %v252, 0.2
  %v730 = vmul.f32 %v341, 0.2
  %v731 = vmul.f32 %v430, 0.2
  %v732 = vmul.f32 %v519, 0.2
  %v733 = vmul.f32 %v254, 0.2
  %v734 = vmul.f32 %v343, 0.2
  %v735 = vmul.f32 %v432, 0.2
  %v736 = vmul.f32 %v521, 0.2
  %v737 = vmul.f32 %v257, 0.2
  %v738 = vmul.f32 %v346, 0.2
  %v739 = vmul.f32 %v435, 0.2
  %v740 = vmul.f32 %v524, 0.2
  %v741 = vmul.f32 %v259, 0.2
  %v742 = vmul.f32 %v348, 0.2
  %v743 = vmul.f32 %v437, 0.2
  %v744 = vmul.f32 %v526, 0.2
  %v745 = vmul.f32 %v262, 0.2
  %v746 = vmul.f32 %v351, 0.2
  %v747 = vmul.f32 %v440, 0.2
  %v748 = vmul.f32 %v529, 0.2
  %v749 = vmul.f32 %v264, 0.2
  %v750 = vmul.f32 %v353, 0.2
  %v751 = vmul.f32 %v442, 0.2
  %v752 = vmul.f32 %v531, 0.2
  %v753 = vmul.f32 %v267, 0.2
  %v754 = vmul.f32 %v356, 0.2
  %v755 = vmul.f32 %v445, 0.2
  %v756 = vmul.f32 %v534, 0.2
  %v757 = vmul.f32 %v269, 0.2
  %v758 = vmul.f32 %v358, 0.2
  %v759 = vmul.f32 %v447, 0.2
  %v760 = vmul.f32 %v536, 0.2
  %v761 = vmul.f32 %v272, 0.2
  %v762 = vmul.f32 %v361, 0.2
  %v763 = vmul.f32 %v450, 0.2
  %v764 = vmul.f32 %v539, 0.2
  %v765 = vmul.f32 %v274, 0.2
  %v766 = vmul.f32 %v363, 0.2
  %v767 = vmul.f32 %v452, 0.2
  %v768 = vmul.f32 %v541, 0.2
  %v769 = vmul.f32 %v277, 0.2
  %v770 = vmul.f32 %v366, 0.2
  %v771 = vmul.f32 %v455, 0.2
  %v772 = vmul.f32 %v544, 0.2
  %v773 = vmul.f32 %v279, 0.2
  %v774 = vmul.f32 %v368, 0.2
  %v775 = vmul.f32 %v457, 0.2
  %v776 = vmul.f32 %v546, 0.2
  %v777 = vmul.f32 %v282, 0.2
  %v778 = vmul.f32 %v371, 0.2
  %v779 = vmul.f32 %v460, 0.2
  %v780 = vmul.f32 %v549, 0.2
  %v781 = vmul.f32 %v284, 0.2
  %v782 = vmul.f32 %v373, 0.2
  %v783 = vmul.f32 %v462, 0.2
  %v784 = vmul.f32 %v551, 0.2
  %v785 = vmul.f32 %v287, 0.2
  %v786 = vmul.f32 %v376, 0.2
  %v787 = vmul.f32 %v465, 0.2
  %v788 = vmul.f32 %v554, 0.2
  %v789 = vmul.f32 %v289, 0.2
  %v790 = vmul.f32 %v378, 0.2
  %v791 = vmul.f32 %v467, 0.2
  %v792 = vmul.f32 %v556, 0.2
  %v793 = vmul.f32 %v292, 0.2
  %v794 = vmul.f32 %v381, 0.2
  %v795 = vmul.f32 %v470, 0.2
  %v796 = vmul.f32 %v559, 0.2
  %v797 = vmul.f32 %v294, 0.2
  %v798 = vmul.f32 %v383, 0.2
  %v799 = vmul.f32 %v472, 0.2
  %v800 = vmul.f32 %v561, 0.2
  %v801 = vmul.f32 %v297, 0.2
  %v802 = vmul.f32 %v386, 0.2
  %v803 = vmul.f32 %v475, 0.2
  %v804 = vmul.f32 %v564, 0.2
  %v805 = vmul.f32 %v299, 0.2
  %v806 = vmul.f32 %v388, 0.2
  %v807 = vmul.f32 %v477, 0.2
  %v808 = vmul.f32 %v566, 0.2
  %v809 = vmul.f32 %v302, 0.2
  %v810 = vmul.f32 %v391, 0.2
  %v811 = vmul.f32 %v480, 0.2
  %v812 = vmul.f32 %v569, 0.2
  %v813 = vmul.f32 %v304, 0.2
  %v814 = vmul.f32 %v393, 0.2
  %v815 = vmul.f32 %v482, 0.2
  %v816 = vmul.f32 %v571, 0.2
  %v817 = vmul.f32 %v307, 0.2
  %v818 = vmul.f32 %v396, 0.2
  %v819 = vmul.f32 %v485, 0.2
  %v820 = vmul.f32 %v574, 0.2
  %v821 = vmul.f32 %v309, 0.2
  %v822 = vmul.f32 %v398, 0.2
  %v823 = vmul.f32 %v487, 0.2
  %v824 = vmul.f32 %v576, 0.2
  %v825 = vmul.f32 %v312, 0.2
  %v826 = vmul.f32 %v401, 0.2
  %v827 = vmul.f32 %v490, 0.2
  %v828 = vmul.f32 %v579, 0.2
  %v829 = vmul.f32 %v314, 0.2
  %v830 = vmul.f32 %v403, 0.2
  %v831 = vmul.f32 %v492, 0.2
  %v832 = vmul.f32 %v581, 0.2
  %v833 = vmul.f32 %v317, 0.2
  %v834 = vmul.f32 %v406, 0.2
  %v835 = vmul.f32 %v495, 0.2
  %v836 = vmul.f32 %v584, 0.2
  %v837 = vmul.f32 %v319, 0.2
  %v838 = vmul.f32 %v408, 0.2
  %v839 = vmul.f32 %v497, 0.2
  %v840 = vmul.f32 %v586, 0.2
  %v841 = vmul.f32 %v322, 0.2
  %v842 = vmul.f32 %v411, 0.2
  %v843 = vmul.f32 %v500, 0.2
  %v844 = vmul.f32 %v589, 0.2
  %v845 = vmul.f32 %v324, 0.2
  %v846 = vmul.f32 %v413, 0.2
  %v847 = vmul.f32 %v502, 0.2
  %v848 = vmul.f32 %v591, 0.2
  %v849 = vsel %vm593, %v247, %v721
  %v850 = vsel %vm594, %v336, %v722
  %v851 = vsel %vm595, %v425, %v723
  %v852 = vsel %vm596, %v514, %v724
  %v853 = vsel %vm597, %v249, %v725
  %v854 = vsel %vm598, %v338, %v726
  %v855 = vsel %vm599, %v427, %v727
  %v856 = vsel %vm600, %v516, %v728
  %v857 = vsel %vm601, %v252, %v729
  %v858 = vsel %vm602, %v341, %v730
  %v859 = vsel %vm603, %v430, %v731
  %v860 = vsel %vm604, %v519, %v732
  %v861 = vsel %vm605, %v254, %v733
  %v862 = vsel %vm606, %v343, %v734
  %v863 = vsel %vm607, %v432, %v735
  %v864 = vsel %vm608, %v521, %v736
  %v865 = vsel %vm609, %v257, %v737
  %v866 = vsel %vm610, %v346, %v738
  %v867 = vsel %vm611, %v435, %v739
  %v868 = vsel %vm612, %v524, %v740
  %v869 = vsel %vm613, %v259, %v741
  %v870 = vsel %vm614, %v348, %v742
  %v871 = vsel %vm615, %v437, %v743
  %v872 = vsel %vm616, %v526, %v744
  %v873 = vsel %vm617, %v262, %v745
  %v874 = vsel %vm618, %v351, %v746
  %v875 = vsel %vm619, %v440, %v747
  %v876 = vsel %vm620, %v529, %v748
  %v877 = vsel %vm621, %v264, %v749
  %v878 = vsel %vm622, %v353, %v750
  %v879 = vsel %vm623, %v442, %v751
  %v880 = vsel %vm624, %v531, %v752
  %v881 = vsel %vm625, %v267, %v753
  %v882 = vsel %vm626, %v356, %v754
  %v883 = vsel %vm627, %v445, %v755
  %v884 = vsel %vm628, %v534, %v756
  %v885 = vsel %vm629, %v269, %v757
  %v886 = vsel %vm630, %v358, %v758
  %v887 = vsel %vm631, %v447, %v759
  %v888 = vsel %vm632, %v536, %v760
  %v889 = vsel %vm633, %v272, %v761
  %v890 = vsel %vm634, %v361, %v762
  %v891 = vsel %vm635, %v450, %v763
  %v892 = vsel %vm636, %v539, %v764
  %v893 = vsel %vm637, %v274, %v765
  %v894 = vsel %vm638, %v363, %v766
  %v895 = vsel %vm639, %v452, %v767
  %v896 = vsel %vm640, %v541, %v768
  %v897 = vsel %vm641, %v277, %v769
  %v898 = vsel %vm642, %v366, %v770
  %v899 = vsel %vm643, %v455, %v771
  %v900 = vsel %vm644, %v544, %v772
  %v901 = vsel %vm645, %v279, %v773
  %v902 = vsel %vm646, %v368, %v774
  %v903 = vsel %vm647, %v457, %v775
  %v904 = vsel %vm648, %v546, %v776
  %v905 = vsel %vm649, %v282, %v777
  %v906 = vsel %vm650, %v371, %v778
  %v907 = vsel %vm651, %v460, %v779
  %v908 = vsel %vm652, %v549, %v780
  %v909 = vsel %vm653, %v284, %v781
  %v910 = vsel %vm654, %v373, %v782
  %v911 = vsel %vm655, %v462, %v783
  %v912 = vsel %vm656, %v551, %v784
  %v913 = vsel %vm657, %v287, %v785
  %v914 = vsel %vm658, %v376, %v786
  %v915 = vsel %vm659, %v465, %v787
  %v916 = vsel %vm660, %v554, %v788
  %v917 = vsel %vm661, %v289, %v789
  %v918 = vsel %vm662, %v378, %v790
  %v919 = vsel %vm663, %v467, %v791
  %v920 = vsel %vm664, %v556, %v792
  %v921 = vsel %vm665, %v292, %v793
  %v922 = vsel %vm666, %v381, %v794
  %v923 = vsel %vm667, %v470, %v795
  %v924 = vsel %vm668, %v559, %v796
  %v925 = vsel %vm669, %v294, %v797
  %v926 = vsel %vm670, %v383, %v798
  %v927 = vsel %vm671, %v472, %v799
  %v928 = vsel %vm672, %v561, %v800
  %v929 = vsel %vm673, %v297, %v801
  %v930 = vsel %vm674, %v386, %v802
  %v931 = vsel %vm675, %v475, %v803
  %v932 = vsel %vm676, %v564, %v804
  %v933 = vsel %vm677, %v299, %v805
  %v934 = vsel %vm678, %v388, %v806
  %v935 = vsel %vm679, %v477, %v807
  %v936 = vsel %vm680, %v566, %v808
  %v937 = vsel %vm681, %v302, %v809
  %v938 = vsel %vm682, %v391, %v810
  %v939 = vsel %vm683, %v480, %v811
  %v940 = vsel %vm684, %v569, %v812
  %v941 = vsel %vm685, %v304, %v813
  %v942 = vsel %vm686, %v393, %v814
  %v943 = vsel %vm687, %v482, %v815
  %v944 = vsel %vm688, %v571, %v816
  %v945 = vsel %vm689, %v307, %v817
  %v946 = vsel %vm690, %v396, %v818
  %v947 = vsel %vm691, %v485, %v819
  %v948 = vsel %vm692, %v574, %v820
  %v949 = vsel %vm693, %v309, %v821
  %v950 = vsel %vm694, %v398, %v822
  %v951 = vsel %vm695, %v487, %v823
  %v952 = vsel %vm696, %v576, %v824
  %v953 = vsel %vm697, %v312, %v825
  %v954 = vsel %vm698, %v401, %v826
  %v955 = vsel %vm699, %v490, %v827
  %v956 = vsel %vm700, %v579, %v828
  %v957 = vsel %vm701, %v314, %v829
  %v958 = vsel %vm702, %v403, %v830
  %v959 = vsel %vm703, %v492, %v831
  %v960 = vsel %vm704, %v581, %v832
  %v961 = vsel %vm705, %v317, %v833
  %v962 = vsel %vm706, %v406, %v834
  %v963 = vsel %vm707, %v495, %v835
  %v964 = vsel %vm708, %v584, %v836
  %v965 = vsel %vm709, %v319, %v837
  %v966 = vsel %vm710, %v408, %v838
  %v967 = vsel %vm711, %v497, %v839
  %v968 = vsel %vm712, %v586, %v840
  %v969 = vsel %vm713, %v322, %v841
  %v970 = vsel %vm714, %v411, %v842
  %v971 = vsel %vm715, %v500, %v843
  %v972 = vsel %vm716, %v589, %v844
  %v973 = vsel %vm717, %v324, %v845
  %v974 = vsel %vm718, %v413, %v846
  %v975 = vsel %vm719, %v502, %v847
  %v976 = vsel %vm720, %v591, %v848
  %v977 = vpack.c.bf16 %v853, %v849
  %v978 = vpack.c.bf16 %v854, %v850
  %v979 = vpack.c.bf16 %v855, %v851
  %v980 = vpack.c.bf16 %v856, %v852
  %v981 = vpack.c.bf16 %v861, %v857
  %v982 = vpack.c.bf16 %v862, %v858
  %v983 = vpack.c.bf16 %v863, %v859
  %v984 = vpack.c.bf16 %v864, %v860
  %v985 = vpack.c.bf16 %v869, %v865
  %v986 = vpack.c.bf16 %v870, %v866
  %v987 = vpack.c.bf16 %v871, %v867
  %v988 = vpack.c.bf16 %v872, %v868
  %v989 = vpack.c.bf16 %v877, %v873
  %v990 = vpack.c.bf16 %v878, %v874
  %v991 = vpack.c.bf16 %v879, %v875
  %v992 = vpack.c.bf16 %v880, %v876
  %v993 = vpack.c.bf16 %v885, %v881
  %v994 = vpack.c.bf16 %v886, %v882
  %v995 = vpack.c.bf16 %v887, %v883
  %v996 = vpack.c.bf16 %v888, %v884
  %v997 = vpack.c.bf16 %v893, %v889
  %v998 = vpack.c.bf16 %v894, %v890
  %v999 = vpack.c.bf16 %v895, %v891
  %v1000 = vpack.c.bf16 %v896, %v892
  %v1001 = vpack.c.bf16 %v901, %v897
  %v1002 = vpack.c.bf16 %v902, %v898
  %v1003 = vpack.c.bf16 %v903, %v899
  %v1004 = vpack.c.bf16 %v904, %v900
  %v1005 = vpack.c.bf16 %v909, %v905
  %v1006 = vpack.c.bf16 %v910, %v906
  %v1007 = vpack.c.bf16 %v911, %v907
  %v1008 = vpack.c.bf16 %v912, %v908
  %v1009 = vpack.c.bf16 %v917, %v913
  %v1010 = vpack.c.bf16 %v918, %v914
  %v1011 = vpack.c.bf16 %v919, %v915
  %v1012 = vpack.c.bf16 %v920, %v916
  %v1013 = vpack.c.bf16 %v925, %v921
  %v1014 = vpack.c.bf16 %v926, %v922
  %v1015 = vpack.c.bf16 %v927, %v923
  %v1016 = vpack.c.bf16 %v928, %v924
  %v1017 = vpack.c.bf16 %v933, %v929
  %v1018 = vpack.c.bf16 %v934, %v930
  %v1019 = vpack.c.bf16 %v935, %v931
  %v1020 = vpack.c.bf16 %v936, %v932
  %v1021 = vpack.c.bf16 %v941, %v937
  %v1022 = vpack.c.bf16 %v942, %v938
  %v1023 = vpack.c.bf16 %v943, %v939
  %v1024 = vpack.c.bf16 %v944, %v940
  %v1025 = vpack.c.bf16 %v949, %v945
  %v1026 = vpack.c.bf16 %v950, %v946
  %v1027 = vpack.c.bf16 %v951, %v947
  %v1028 = vpack.c.bf16 %v952, %v948
  %v1029 = vpack.c.bf16 %v957, %v953
  %v1030 = vpack.c.bf16 %v958, %v954
  %v1031 = vpack.c.bf16 %v959, %v955
  %v1032 = vpack.c.bf16 %v960, %v956
  %v1033 = vpack.c.bf16 %v965, %v961
  %v1034 = vpack.c.bf16 %v966, %v962
  %v1035 = vpack.c.bf16 %v967, %v963
  %v1036 = vpack.c.bf16 %v968, %v964
  %v1037 = vpack.c.bf16 %v973, %v969
  %v1038 = vpack.c.bf16 %v974, %v970
  %v1039 = vpack.c.bf16 %v975, %v971
  %v1040 = vpack.c.bf16 %v976, %v972
  %v1041 = vld [vmem:[%s3] sm:$0xff]
  %v1042 = vld [vmem:[%s3 + $0x8] sm:$0xff]
  %v1043 = vld [vmem:[%s3 + $0x10] sm:$0xff]
  %v1044 = vld [vmem:[%s3 + $0x18] sm:$0xff]
  %v1045 = vld [vmem:[%s3 + $0x20] sm:$0xff]
  %v1046 = vld [vmem:[%s3 + $0x28] sm:$0xff]
  %v1047 = vld [vmem:[%s3 + $0x30] sm:$0xff]
  %v1048 = vld [vmem:[%s3 + $0x38] sm:$0xff]
  %v1049 = vld [vmem:[%s3 + $0x40] sm:$0xff]
  %v1050 = vld [vmem:[%s3 + $0x48] sm:$0xff]
  %v1051 = vld [vmem:[%s3 + $0x50] sm:$0xff]
  %v1052 = vld [vmem:[%s3 + $0x58] sm:$0xff]
  %v1053 = vld [vmem:[%s3 + $0x60] sm:$0xff]
  %v1054 = vld [vmem:[%s3 + $0x68] sm:$0xff]
  %v1055 = vld [vmem:[%s3 + $0x70] sm:$0xff]
  %v1056 = vld [vmem:[%s3 + $0x78] sm:$0xff]
  %v1057 = vld [vmem:[%s3 + $0x80] sm:$0xff]
  %v1058 = vld [vmem:[%s3 + $0x88] sm:$0xff]
  %v1059 = vld [vmem:[%s3 + $0x90] sm:$0xff]
  %v1060 = vld [vmem:[%s3 + $0x98] sm:$0xff]
  %v1061 = vld [vmem:[%s3 + $0xa0] sm:$0xff]
  %v1062 = vld [vmem:[%s3 + $0xa8] sm:$0xff]
  %v1063 = vld [vmem:[%s3 + $0xb0] sm:$0xff]
  %v1064 = vld [vmem:[%s3 + $0xb8] sm:$0xff]
  %v1065 = vld [vmem:[%s3 + $0xc0] sm:$0xff]
  %v1066 = vld [vmem:[%s3 + $0xc8] sm:$0xff]
  %v1067 = vld [vmem:[%s3 + $0xd0] sm:$0xff]
  %v1068 = vld [vmem:[%s3 + $0xd8] sm:$0xff]
  %v1069 = vld [vmem:[%s3 + $0xe0] sm:$0xff]
  %v1070 = vld [vmem:[%s3 + $0xe8] sm:$0xff]
  %v1071 = vld [vmem:[%s3 + $0xf0] sm:$0xff]
  %v1072 = vld [vmem:[%s3 + $0xf8] sm:$0xff]
  %v1073 = vld [vmem:[%s3 + $0x100] sm:$0xff]
  %v1074 = vld [vmem:[%s3 + $0x108] sm:$0xff]
  %v1075 = vld [vmem:[%s3 + $0x110] sm:$0xff]
  %v1076 = vld [vmem:[%s3 + $0x118] sm:$0xff]
  %v1077 = vld [vmem:[%s3 + $0x120] sm:$0xff]
  %v1078 = vld [vmem:[%s3 + $0x128] sm:$0xff]
  %v1079 = vld [vmem:[%s3 + $0x130] sm:$0xff]
  %v1080 = vld [vmem:[%s3 + $0x138] sm:$0xff]
  %v1081 = vld [vmem:[%s3 + $0x140] sm:$0xff]
  %v1082 = vld [vmem:[%s3 + $0x148] sm:$0xff]
  %v1083 = vld [vmem:[%s3 + $0x150] sm:$0xff]
  %v1084 = vld [vmem:[%s3 + $0x158] sm:$0xff]
  %v1085 = vld [vmem:[%s3 + $0x160] sm:$0xff]
  %v1086 = vld [vmem:[%s3 + $0x168] sm:$0xff]
  %v1087 = vld [vmem:[%s3 + $0x170] sm:$0xff]
  %v1088 = vld [vmem:[%s3 + $0x178] sm:$0xff]
  %v1089 = vld [vmem:[%s3 + $0x180] sm:$0xff]
  %v1090 = vld [vmem:[%s3 + $0x188] sm:$0xff]
  %v1091 = vld [vmem:[%s3 + $0x190] sm:$0xff]
  %v1092 = vld [vmem:[%s3 + $0x198] sm:$0xff]
  %v1093 = vld [vmem:[%s3 + $0x1a0] sm:$0xff]
  %v1094 = vld [vmem:[%s3 + $0x1a8] sm:$0xff]
  %v1095 = vld [vmem:[%s3 + $0x1b0] sm:$0xff]
  %v1096 = vld [vmem:[%s3 + $0x1b8] sm:$0xff]
  %v1097 = vld [vmem:[%s3 + $0x1c0] sm:$0xff]
  %v1098 = vld [vmem:[%s3 + $0x1c8] sm:$0xff]
  %v1099 = vld [vmem:[%s3 + $0x1d0] sm:$0xff]
  %v1100 = vld [vmem:[%s3 + $0x1d8] sm:$0xff]
  %v1101 = vld [vmem:[%s3 + $0x1e0] sm:$0xff]
  %v1102 = vld [vmem:[%s3 + $0x1e8] sm:$0xff]
  %v1103 = vld [vmem:[%s3 + $0x1f0] sm:$0xff]
  %v1104 = vld [vmem:[%s3 + $0x1f8] sm:$0xff]
  %v1105 = vld [vmem:[%s4] sm:$0x3]
  %v1107 = vperm.slane %v1105, 0
  %v1108 = vperm.slane %v1105, 1
  %v1175 = vunpack.c.l.b16 %v1041
  %v1176 = vunpack.c.h.b16 %v1041
  %v1177 = vunpack.c.l.b16 %v1042
  %v1178 = vunpack.c.h.b16 %v1042
  %v1179 = vunpack.c.l.b16 %v1043
  %v1180 = vunpack.c.h.b16 %v1043
  %v1181 = vunpack.c.l.b16 %v1044
  %v1182 = vunpack.c.h.b16 %v1044
  %v1183 = vunpack.c.l.b16 %v1045
  %v1184 = vunpack.c.h.b16 %v1045
  %v1185 = vunpack.c.l.b16 %v1046
  %v1186 = vunpack.c.h.b16 %v1046
  %v1187 = vunpack.c.l.b16 %v1047
  %v1188 = vunpack.c.h.b16 %v1047
  %v1189 = vunpack.c.l.b16 %v1048
  %v1190 = vunpack.c.h.b16 %v1048
  %v1191 = vunpack.c.l.b16 %v1049
  %v1192 = vunpack.c.h.b16 %v1049
  %v1193 = vunpack.c.l.b16 %v1050
  %v1194 = vunpack.c.h.b16 %v1050
  %v1195 = vunpack.c.l.b16 %v1051
  %v1196 = vunpack.c.h.b16 %v1051
  %v1197 = vunpack.c.l.b16 %v1052
  %v1198 = vunpack.c.h.b16 %v1052
  %v1199 = vunpack.c.l.b16 %v1053
  %v1200 = vunpack.c.h.b16 %v1053
  %v1201 = vunpack.c.l.b16 %v1054
  %v1202 = vunpack.c.h.b16 %v1054
  %v1203 = vunpack.c.l.b16 %v1055
  %v1204 = vunpack.c.h.b16 %v1055
  %v1205 = vunpack.c.l.b16 %v1056
  %v1206 = vunpack.c.h.b16 %v1056
  %v1207 = vunpack.c.l.b16 %v1057
  %v1208 = vunpack.c.h.b16 %v1057
  %v1209 = vunpack.c.l.b16 %v1058
  %v1210 = vunpack.c.h.b16 %v1058
  %v1211 = vunpack.c.l.b16 %v1059
  %v1212 = vunpack.c.h.b16 %v1059
  %v1213 = vunpack.c.l.b16 %v1060
  %v1214 = vunpack.c.h.b16 %v1060
  %v1215 = vunpack.c.l.b16 %v1061
  %v1216 = vunpack.c.h.b16 %v1061
  %v1217 = vunpack.c.l.b16 %v1062
  %v1218 = vunpack.c.h.b16 %v1062
  %v1219 = vunpack.c.l.b16 %v1063
  %v1220 = vunpack.c.h.b16 %v1063
  %v1221 = vunpack.c.l.b16 %v1064
  %v1222 = vunpack.c.h.b16 %v1064
  %v1223 = vunpack.c.l.b16 %v1065
  %v1224 = vunpack.c.h.b16 %v1065
  %v1225 = vunpack.c.l.b16 %v1066
  %v1226 = vunpack.c.h.b16 %v1066
  %v1227 = vunpack.c.l.b16 %v1067
  %v1228 = vunpack.c.h.b16 %v1067
  %v1229 = vunpack.c.l.b16 %v1068
  %v1230 = vunpack.c.h.b16 %v1068
  %v1231 = vunpack.c.l.b16 %v1069
  %v1232 = vunpack.c.h.b16 %v1069
  %v1233 = vunpack.c.l.b16 %v1070
  %v1234 = vunpack.c.h.b16 %v1070
  %v1235 = vunpack.c.l.b16 %v1071
  %v1236 = vunpack.c.h.b16 %v1071
  %v1237 = vunpack.c.l.b16 %v1072
  %v1238 = vunpack.c.h.b16 %v1072
  %v1239 = vunpack.c.l.b16 %v1073
  %v1240 = vunpack.c.h.b16 %v1073
  %v1241 = vunpack.c.l.b16 %v1074
  %v1242 = vunpack.c.h.b16 %v1074
  %v1243 = vunpack.c.l.b16 %v1075
  %v1244 = vunpack.c.h.b16 %v1075
  %v1245 = vunpack.c.l.b16 %v1076
  %v1246 = vunpack.c.h.b16 %v1076
  %v1247 = vunpack.c.l.b16 %v1077
  %v1248 = vunpack.c.h.b16 %v1077
  %v1249 = vunpack.c.l.b16 %v1078
  %v1250 = vunpack.c.h.b16 %v1078
  %v1251 = vunpack.c.l.b16 %v1079
  %v1252 = vunpack.c.h.b16 %v1079
  %v1253 = vunpack.c.l.b16 %v1080
  %v1254 = vunpack.c.h.b16 %v1080
  %v1255 = vunpack.c.l.b16 %v1081
  %v1256 = vunpack.c.h.b16 %v1081
  %v1257 = vunpack.c.l.b16 %v1082
  %v1258 = vunpack.c.h.b16 %v1082
  %v1259 = vunpack.c.l.b16 %v1083
  %v1260 = vunpack.c.h.b16 %v1083
  %v1261 = vunpack.c.l.b16 %v1084
  %v1262 = vunpack.c.h.b16 %v1084
  %v1263 = vunpack.c.l.b16 %v1085
  %v1264 = vunpack.c.h.b16 %v1085
  %v1265 = vunpack.c.l.b16 %v1086
  %v1266 = vunpack.c.h.b16 %v1086
  %v1267 = vunpack.c.l.b16 %v1087
  %v1268 = vunpack.c.h.b16 %v1087
  %v1269 = vunpack.c.l.b16 %v1088
  %v1270 = vunpack.c.h.b16 %v1088
  %v1271 = vunpack.c.l.b16 %v1089
  %v1272 = vunpack.c.h.b16 %v1089
  %v1273 = vunpack.c.l.b16 %v1090
  %v1274 = vunpack.c.h.b16 %v1090
  %v1275 = vunpack.c.l.b16 %v1091
  %v1276 = vunpack.c.h.b16 %v1091
  %v1277 = vunpack.c.l.b16 %v1092
  %v1278 = vunpack.c.h.b16 %v1092
  %v1279 = vunpack.c.l.b16 %v1093
  %v1280 = vunpack.c.h.b16 %v1093
  %v1281 = vunpack.c.l.b16 %v1094
  %v1282 = vunpack.c.h.b16 %v1094
  %v1283 = vunpack.c.l.b16 %v1095
  %v1284 = vunpack.c.h.b16 %v1095
  %v1285 = vunpack.c.l.b16 %v1096
  %v1286 = vunpack.c.h.b16 %v1096
  %v1287 = vunpack.c.l.b16 %v1097
  %v1288 = vunpack.c.h.b16 %v1097
  %v1289 = vunpack.c.l.b16 %v1098
  %v1290 = vunpack.c.h.b16 %v1098
  %v1291 = vunpack.c.l.b16 %v1099
  %v1292 = vunpack.c.h.b16 %v1099
  %v1293 = vunpack.c.l.b16 %v1100
  %v1294 = vunpack.c.h.b16 %v1100
  %v1295 = vunpack.c.l.b16 %v1101
  %v1296 = vunpack.c.h.b16 %v1101
  %v1297 = vunpack.c.l.b16 %v1102
  %v1298 = vunpack.c.h.b16 %v1102
  %v1299 = vunpack.c.l.b16 %v1103
  %v1300 = vunpack.c.h.b16 %v1103
  %v1301 = vunpack.c.l.b16 %v1104
  %v1302 = vunpack.c.h.b16 %v1104
  %v1303 = vpack.c.b16 %v1177, %v1175
  %v1304 = vpack.c.b16 %v1178, %v1176
  %v1305 = vpack.c.b16 %v1181, %v1179
  %v1306 = vpack.c.b16 %v1182, %v1180
  %v1307 = vpack.c.b16 %v1185, %v1183
  %v1308 = vpack.c.b16 %v1186, %v1184
  %v1309 = vpack.c.b16 %v1189, %v1187
  %v1310 = vpack.c.b16 %v1190, %v1188
  %v1311 = vpack.c.b16 %v1193, %v1191
  %v1312 = vpack.c.b16 %v1194, %v1192
  %v1313 = vpack.c.b16 %v1197, %v1195
  %v1314 = vpack.c.b16 %v1198, %v1196
  %v1315 = vpack.c.b16 %v1201, %v1199
  %v1316 = vpack.c.b16 %v1202, %v1200
  %v1317 = vpack.c.b16 %v1205, %v1203
  %v1318 = vpack.c.b16 %v1206, %v1204
  %v1319 = vpack.c.b16 %v1209, %v1207
  %v1320 = vpack.c.b16 %v1210, %v1208
  %v1321 = vpack.c.b16 %v1213, %v1211
  %v1322 = vpack.c.b16 %v1214, %v1212
  %v1323 = vpack.c.b16 %v1217, %v1215
  %v1324 = vpack.c.b16 %v1218, %v1216
  %v1325 = vpack.c.b16 %v1221, %v1219
  %v1326 = vpack.c.b16 %v1222, %v1220
  %v1327 = vpack.c.b16 %v1225, %v1223
  %v1328 = vpack.c.b16 %v1226, %v1224
  %v1329 = vpack.c.b16 %v1229, %v1227
  %v1330 = vpack.c.b16 %v1230, %v1228
  %v1331 = vpack.c.b16 %v1233, %v1231
  %v1332 = vpack.c.b16 %v1234, %v1232
  %v1333 = vpack.c.b16 %v1237, %v1235
  %v1334 = vpack.c.b16 %v1238, %v1236
  %v1335 = vpack.c.b16 %v1241, %v1239
  %v1336 = vpack.c.b16 %v1242, %v1240
  %v1337 = vpack.c.b16 %v1245, %v1243
  %v1338 = vpack.c.b16 %v1246, %v1244
  %v1339 = vpack.c.b16 %v1249, %v1247
  %v1340 = vpack.c.b16 %v1250, %v1248
  %v1341 = vpack.c.b16 %v1253, %v1251
  %v1342 = vpack.c.b16 %v1254, %v1252
  %v1343 = vpack.c.b16 %v1257, %v1255
  %v1344 = vpack.c.b16 %v1258, %v1256
  %v1345 = vpack.c.b16 %v1261, %v1259
  %v1346 = vpack.c.b16 %v1262, %v1260
  %v1347 = vpack.c.b16 %v1265, %v1263
  %v1348 = vpack.c.b16 %v1266, %v1264
  %v1349 = vpack.c.b16 %v1269, %v1267
  %v1350 = vpack.c.b16 %v1270, %v1268
  %v1351 = vpack.c.b16 %v1273, %v1271
  %v1352 = vpack.c.b16 %v1274, %v1272
  %v1353 = vpack.c.b16 %v1277, %v1275
  %v1354 = vpack.c.b16 %v1278, %v1276
  %v1355 = vpack.c.b16 %v1281, %v1279
  %v1356 = vpack.c.b16 %v1282, %v1280
  %v1357 = vpack.c.b16 %v1285, %v1283
  %v1358 = vpack.c.b16 %v1286, %v1284
  %v1359 = vpack.c.b16 %v1289, %v1287
  %v1360 = vpack.c.b16 %v1290, %v1288
  %v1361 = vpack.c.b16 %v1293, %v1291
  %v1362 = vpack.c.b16 %v1294, %v1292
  %v1363 = vpack.c.b16 %v1297, %v1295
  %v1364 = vpack.c.b16 %v1298, %v1296
  %v1365 = vpack.c.b16 %v1301, %v1299
  %v1366 = vpack.c.b16 %v1302, %v1300
  %1431 = vmatpush.bf16.msra.mxu0 %v1317
  %1432 = vmatpush.bf16.msra.mxu0 %v1315
  %1433 = vmatpush.bf16.msra.mxu0 %v1313
  %1434 = vmatpush.bf16.msra.mxu0 %v1311
  %1435 = vmatpush.bf16.msra.mxu0 %v1309
  %1436 = vmatpush.bf16.msra.mxu0 %v1307
  %1437 = vmatpush.bf16.msra.mxu0 %v1305
  %1438 = vmatpush.bf16.msra.mxu0 %v1303
  %1439 = vmatmul.bf16.gmra.mxu0 %v977
  %v1440 = vpop.f32.mrf.mxu0
  %v1441 = vadd.f32 %v1107, %v1440
  %v1442 = vpop.f32.mrf.mxu0
  %v1443 = vadd.f32 %v1107, %v1442
  %1444 = vmatmul.bf16.gmra.mxu0 %v981
  %v1445 = vpop.f32.mrf.mxu0
  %v1446 = vadd.f32 %v1107, %v1445
  %v1447 = vpop.f32.mrf.mxu0
  %v1448 = vadd.f32 %v1107, %v1447
  %1449 = vmatmul.bf16.gmra.mxu0 %v985
  %v1450 = vpop.f32.mrf.mxu0
  %v1451 = vadd.f32 %v1107, %v1450
  %v1452 = vpop.f32.mrf.mxu0
  %v1453 = vadd.f32 %v1107, %v1452
  %1454 = vmatmul.bf16.gmra.mxu0 %v989
  %v1455 = vpop.f32.mrf.mxu0
  %v1456 = vadd.f32 %v1107, %v1455
  %v1457 = vpop.f32.mrf.mxu0
  %v1458 = vadd.f32 %v1107, %v1457
  %1459 = vmatmul.bf16.gmra.mxu0 %v993
  %v1460 = vpop.f32.mrf.mxu0
  %v1461 = vadd.f32 %v1107, %v1460
  %v1462 = vpop.f32.mrf.mxu0
  %v1463 = vadd.f32 %v1107, %v1462
  %1464 = vmatmul.bf16.gmra.mxu0 %v997
  %v1465 = vpop.f32.mrf.mxu0
  %v1466 = vadd.f32 %v1107, %v1465
  %v1467 = vpop.f32.mrf.mxu0
  %v1468 = vadd.f32 %v1107, %v1467
  %1469 = vmatmul.bf16.gmra.mxu0 %v1001
  %v1470 = vpop.f32.mrf.mxu0
  %v1471 = vadd.f32 %v1107, %v1470
  %v1472 = vpop.f32.mrf.mxu0
  %v1473 = vadd.f32 %v1107, %v1472
  %1474 = vmatmul.bf16.gmra.mxu0 %v1005
  %v1475 = vpop.f32.mrf.mxu0
  %v1476 = vadd.f32 %v1107, %v1475
  %v1477 = vpop.f32.mrf.mxu0
  %v1478 = vadd.f32 %v1107, %v1477
  %1479 = vmatmul.bf16.gmra.mxu0 %v1009
  %v1480 = vpop.f32.mrf.mxu0
  %v1481 = vadd.f32 %v1107, %v1480
  %v1482 = vpop.f32.mrf.mxu0
  %v1483 = vadd.f32 %v1107, %v1482
  %1484 = vmatmul.bf16.gmra.mxu0 %v1013
  %v1485 = vpop.f32.mrf.mxu0
  %v1486 = vadd.f32 %v1107, %v1485
  %v1487 = vpop.f32.mrf.mxu0
  %v1488 = vadd.f32 %v1107, %v1487
  %1489 = vmatmul.bf16.gmra.mxu0 %v1017
  %v1490 = vpop.f32.mrf.mxu0
  %v1491 = vadd.f32 %v1107, %v1490
  %v1492 = vpop.f32.mrf.mxu0
  %v1493 = vadd.f32 %v1107, %v1492
  %1494 = vmatmul.bf16.gmra.mxu0 %v1021
  %v1495 = vpop.f32.mrf.mxu0
  %v1496 = vadd.f32 %v1107, %v1495
  %v1497 = vpop.f32.mrf.mxu0
  %v1498 = vadd.f32 %v1107, %v1497
  %1499 = vmatmul.bf16.gmra.mxu0 %v1025
  %v1500 = vpop.f32.mrf.mxu0
  %v1501 = vadd.f32 %v1107, %v1500
  %v1502 = vpop.f32.mrf.mxu0
  %v1503 = vadd.f32 %v1107, %v1502
  %1504 = vmatmul.bf16.gmra.mxu0 %v1029
  %v1505 = vpop.f32.mrf.mxu0
  %v1506 = vadd.f32 %v1107, %v1505
  %v1507 = vpop.f32.mrf.mxu0
  %v1508 = vadd.f32 %v1107, %v1507
  %1509 = vmatmul.bf16.gmra.mxu0 %v1033
  %v1510 = vpop.f32.mrf.mxu0
  %v1511 = vadd.f32 %v1107, %v1510
  %v1512 = vpop.f32.mrf.mxu0
  %v1513 = vadd.f32 %v1107, %v1512
  %1514 = vmatmul.bf16.gmra.mxu0 %v1037
  %v1515 = vpop.f32.mrf.mxu0
  %v1516 = vadd.f32 %v1107, %v1515
  %v1517 = vpop.f32.mrf.mxu0
  %v1518 = vadd.f32 %v1107, %v1517
  %1519 = vdwg.mxu0
  %1520 = vmatpush.bf16.msra.mxu0 %v1333
  %1521 = vmatpush.bf16.msra.mxu0 %v1331
  %1522 = vmatpush.bf16.msra.mxu0 %v1329
  %1523 = vmatpush.bf16.msra.mxu0 %v1327
  %1524 = vmatpush.bf16.msra.mxu0 %v1325
  %1525 = vmatpush.bf16.msra.mxu0 %v1323
  %1526 = vmatpush.bf16.msra.mxu0 %v1321
  %1527 = vmatpush.bf16.msra.mxu0 %v1319
  %1528 = vmatmul.bf16.gmra.mxu0 %v978
  %v1529 = vpop.f32.mrf.mxu0
  %v1530 = vadd.f32 %v1441, %v1529
  %v1531 = vpop.f32.mrf.mxu0
  %v1532 = vadd.f32 %v1443, %v1531
  %1533 = vmatmul.bf16.gmra.mxu0 %v982
  %v1534 = vpop.f32.mrf.mxu0
  %v1535 = vadd.f32 %v1446, %v1534
  %v1536 = vpop.f32.mrf.mxu0
  %v1537 = vadd.f32 %v1448, %v1536
  %1538 = vmatmul.bf16.gmra.mxu0 %v986
  %v1539 = vpop.f32.mrf.mxu0
  %v1540 = vadd.f32 %v1451, %v1539
  %v1541 = vpop.f32.mrf.mxu0
  %v1542 = vadd.f32 %v1453, %v1541
  %1543 = vmatmul.bf16.gmra.mxu0 %v990
  %v1544 = vpop.f32.mrf.mxu0
  %v1545 = vadd.f32 %v1456, %v1544
  %v1546 = vpop.f32.mrf.mxu0
  %v1547 = vadd.f32 %v1458, %v1546
  %1548 = vmatmul.bf16.gmra.mxu0 %v994
  %v1549 = vpop.f32.mrf.mxu0
  %v1550 = vadd.f32 %v1461, %v1549
  %v1551 = vpop.f32.mrf.mxu0
  %v1552 = vadd.f32 %v1463, %v1551
  %1553 = vmatmul.bf16.gmra.mxu0 %v998
  %v1554 = vpop.f32.mrf.mxu0
  %v1555 = vadd.f32 %v1466, %v1554
  %v1556 = vpop.f32.mrf.mxu0
  %v1557 = vadd.f32 %v1468, %v1556
  %1558 = vmatmul.bf16.gmra.mxu0 %v1002
  %v1559 = vpop.f32.mrf.mxu0
  %v1560 = vadd.f32 %v1471, %v1559
  %v1561 = vpop.f32.mrf.mxu0
  %v1562 = vadd.f32 %v1473, %v1561
  %1563 = vmatmul.bf16.gmra.mxu0 %v1006
  %v1564 = vpop.f32.mrf.mxu0
  %v1565 = vadd.f32 %v1476, %v1564
  %v1566 = vpop.f32.mrf.mxu0
  %v1567 = vadd.f32 %v1478, %v1566
  %1568 = vmatmul.bf16.gmra.mxu0 %v1010
  %v1569 = vpop.f32.mrf.mxu0
  %v1570 = vadd.f32 %v1481, %v1569
  %v1571 = vpop.f32.mrf.mxu0
  %v1572 = vadd.f32 %v1483, %v1571
  %1573 = vmatmul.bf16.gmra.mxu0 %v1014
  %v1574 = vpop.f32.mrf.mxu0
  %v1575 = vadd.f32 %v1486, %v1574
  %v1576 = vpop.f32.mrf.mxu0
  %v1577 = vadd.f32 %v1488, %v1576
  %1578 = vmatmul.bf16.gmra.mxu0 %v1018
  %v1579 = vpop.f32.mrf.mxu0
  %v1580 = vadd.f32 %v1491, %v1579
  %v1581 = vpop.f32.mrf.mxu0
  %v1582 = vadd.f32 %v1493, %v1581
  %1583 = vmatmul.bf16.gmra.mxu0 %v1022
  %v1584 = vpop.f32.mrf.mxu0
  %v1585 = vadd.f32 %v1496, %v1584
  %v1586 = vpop.f32.mrf.mxu0
  %v1587 = vadd.f32 %v1498, %v1586
  %1588 = vmatmul.bf16.gmra.mxu0 %v1026
  %v1589 = vpop.f32.mrf.mxu0
  %v1590 = vadd.f32 %v1501, %v1589
  %v1591 = vpop.f32.mrf.mxu0
  %v1592 = vadd.f32 %v1503, %v1591
  %1593 = vmatmul.bf16.gmra.mxu0 %v1030
  %v1594 = vpop.f32.mrf.mxu0
  %v1595 = vadd.f32 %v1506, %v1594
  %v1596 = vpop.f32.mrf.mxu0
  %v1597 = vadd.f32 %v1508, %v1596
  %1598 = vmatmul.bf16.gmra.mxu0 %v1034
  %v1599 = vpop.f32.mrf.mxu0
  %v1600 = vadd.f32 %v1511, %v1599
  %v1601 = vpop.f32.mrf.mxu0
  %v1602 = vadd.f32 %v1513, %v1601
  %1603 = vmatmul.bf16.gmra.mxu0 %v1038
  %v1604 = vpop.f32.mrf.mxu0
  %v1605 = vadd.f32 %v1516, %v1604
  %v1606 = vpop.f32.mrf.mxu0
  %v1607 = vadd.f32 %v1518, %v1606
  %1608 = vdwg.mxu0
  %1609 = vmatpush.bf16.msra.mxu0 %v1349
  %1610 = vmatpush.bf16.msra.mxu0 %v1347
  %1611 = vmatpush.bf16.msra.mxu0 %v1345
  %1612 = vmatpush.bf16.msra.mxu0 %v1343
  %1613 = vmatpush.bf16.msra.mxu0 %v1341
  %1614 = vmatpush.bf16.msra.mxu0 %v1339
  %1615 = vmatpush.bf16.msra.mxu0 %v1337
  %1616 = vmatpush.bf16.msra.mxu0 %v1335
  %1617 = vmatmul.bf16.gmra.mxu0 %v979
  %v1618 = vpop.f32.mrf.mxu0
  %v1619 = vadd.f32 %v1530, %v1618
  %v1620 = vpop.f32.mrf.mxu0
  %v1621 = vadd.f32 %v1532, %v1620
  %1622 = vmatmul.bf16.gmra.mxu0 %v983
  %v1623 = vpop.f32.mrf.mxu0
  %v1624 = vadd.f32 %v1535, %v1623
  %v1625 = vpop.f32.mrf.mxu0
  %v1626 = vadd.f32 %v1537, %v1625
  %1627 = vmatmul.bf16.gmra.mxu0 %v987
  %v1628 = vpop.f32.mrf.mxu0
  %v1629 = vadd.f32 %v1540, %v1628
  %v1630 = vpop.f32.mrf.mxu0
  %v1631 = vadd.f32 %v1542, %v1630
  %1632 = vmatmul.bf16.gmra.mxu0 %v991
  %v1633 = vpop.f32.mrf.mxu0
  %v1634 = vadd.f32 %v1545, %v1633
  %v1635 = vpop.f32.mrf.mxu0
  %v1636 = vadd.f32 %v1547, %v1635
  %1637 = vmatmul.bf16.gmra.mxu0 %v995
  %v1638 = vpop.f32.mrf.mxu0
  %v1639 = vadd.f32 %v1550, %v1638
  %v1640 = vpop.f32.mrf.mxu0
  %v1641 = vadd.f32 %v1552, %v1640
  %1642 = vmatmul.bf16.gmra.mxu0 %v999
  %v1643 = vpop.f32.mrf.mxu0
  %v1644 = vadd.f32 %v1555, %v1643
  %v1645 = vpop.f32.mrf.mxu0
  %v1646 = vadd.f32 %v1557, %v1645
  %1647 = vmatmul.bf16.gmra.mxu0 %v1003
  %v1648 = vpop.f32.mrf.mxu0
  %v1649 = vadd.f32 %v1560, %v1648
  %v1650 = vpop.f32.mrf.mxu0
  %v1651 = vadd.f32 %v1562, %v1650
  %1652 = vmatmul.bf16.gmra.mxu0 %v1007
  %v1653 = vpop.f32.mrf.mxu0
  %v1654 = vadd.f32 %v1565, %v1653
  %v1655 = vpop.f32.mrf.mxu0
  %v1656 = vadd.f32 %v1567, %v1655
  %1657 = vmatmul.bf16.gmra.mxu0 %v1011
  %v1658 = vpop.f32.mrf.mxu0
  %v1659 = vadd.f32 %v1570, %v1658
  %v1660 = vpop.f32.mrf.mxu0
  %v1661 = vadd.f32 %v1572, %v1660
  %1662 = vmatmul.bf16.gmra.mxu0 %v1015
  %v1663 = vpop.f32.mrf.mxu0
  %v1664 = vadd.f32 %v1575, %v1663
  %v1665 = vpop.f32.mrf.mxu0
  %v1666 = vadd.f32 %v1577, %v1665
  %1667 = vmatmul.bf16.gmra.mxu0 %v1019
  %v1668 = vpop.f32.mrf.mxu0
  %v1669 = vadd.f32 %v1580, %v1668
  %v1670 = vpop.f32.mrf.mxu0
  %v1671 = vadd.f32 %v1582, %v1670
  %1672 = vmatmul.bf16.gmra.mxu0 %v1023
  %v1673 = vpop.f32.mrf.mxu0
  %v1674 = vadd.f32 %v1585, %v1673
  %v1675 = vpop.f32.mrf.mxu0
  %v1676 = vadd.f32 %v1587, %v1675
  %1677 = vmatmul.bf16.gmra.mxu0 %v1027
  %v1678 = vpop.f32.mrf.mxu0
  %v1679 = vadd.f32 %v1590, %v1678
  %v1680 = vpop.f32.mrf.mxu0
  %v1681 = vadd.f32 %v1592, %v1680
  %1682 = vmatmul.bf16.gmra.mxu0 %v1031
  %v1683 = vpop.f32.mrf.mxu0
  %v1684 = vadd.f32 %v1595, %v1683
  %v1685 = vpop.f32.mrf.mxu0
  %v1686 = vadd.f32 %v1597, %v1685
  %1687 = vmatmul.bf16.gmra.mxu0 %v1035
  %v1688 = vpop.f32.mrf.mxu0
  %v1689 = vadd.f32 %v1600, %v1688
  %v1690 = vpop.f32.mrf.mxu0
  %v1691 = vadd.f32 %v1602, %v1690
  %1692 = vmatmul.bf16.gmra.mxu0 %v1039
  %v1693 = vpop.f32.mrf.mxu0
  %v1694 = vadd.f32 %v1605, %v1693
  %v1695 = vpop.f32.mrf.mxu0
  %v1696 = vadd.f32 %v1607, %v1695
  %1697 = vdwg.mxu0
  %1698 = vmatpush.bf16.msra.mxu0 %v1365
  %1699 = vmatpush.bf16.msra.mxu0 %v1363
  %1700 = vmatpush.bf16.msra.mxu0 %v1361
  %1701 = vmatpush.bf16.msra.mxu0 %v1359
  %1702 = vmatpush.bf16.msra.mxu0 %v1357
  %1703 = vmatpush.bf16.msra.mxu0 %v1355
  %1704 = vmatpush.bf16.msra.mxu0 %v1353
  %1705 = vmatpush.bf16.msra.mxu0 %v1351
  %1706 = vmatmul.bf16.gmra.mxu0 %v980
  %v1707 = vpop.f32.mrf.mxu0
  %v1708 = vadd.f32 %v1619, %v1707
  %v1709 = vpop.f32.mrf.mxu0
  %v1710 = vadd.f32 %v1621, %v1709
  %1711 = vmatmul.bf16.gmra.mxu0 %v984
  %v1712 = vpop.f32.mrf.mxu0
  %v1713 = vadd.f32 %v1624, %v1712
  %v1714 = vpop.f32.mrf.mxu0
  %v1715 = vadd.f32 %v1626, %v1714
  %1716 = vmatmul.bf16.gmra.mxu0 %v988
  %v1717 = vpop.f32.mrf.mxu0
  %v1718 = vadd.f32 %v1629, %v1717
  %v1719 = vpop.f32.mrf.mxu0
  %v1720 = vadd.f32 %v1631, %v1719
  %1721 = vmatmul.bf16.gmra.mxu0 %v992
  %v1722 = vpop.f32.mrf.mxu0
  %v1723 = vadd.f32 %v1634, %v1722
  %v1724 = vpop.f32.mrf.mxu0
  %v1725 = vadd.f32 %v1636, %v1724
  %1726 = vmatmul.bf16.gmra.mxu0 %v996
  %v1727 = vpop.f32.mrf.mxu0
  %v1728 = vadd.f32 %v1639, %v1727
  %v1729 = vpop.f32.mrf.mxu0
  %v1730 = vadd.f32 %v1641, %v1729
  %1731 = vmatmul.bf16.gmra.mxu0 %v1000
  %v1732 = vpop.f32.mrf.mxu0
  %v1733 = vadd.f32 %v1644, %v1732
  %v1734 = vpop.f32.mrf.mxu0
  %v1735 = vadd.f32 %v1646, %v1734
  %1736 = vmatmul.bf16.gmra.mxu0 %v1004
  %v1737 = vpop.f32.mrf.mxu0
  %v1738 = vadd.f32 %v1649, %v1737
  %v1739 = vpop.f32.mrf.mxu0
  %v1740 = vadd.f32 %v1651, %v1739
  %1741 = vmatmul.bf16.gmra.mxu0 %v1008
  %v1742 = vpop.f32.mrf.mxu0
  %v1743 = vadd.f32 %v1654, %v1742
  %v1744 = vpop.f32.mrf.mxu0
  %v1745 = vadd.f32 %v1656, %v1744
  %1746 = vmatmul.bf16.gmra.mxu0 %v1012
  %v1747 = vpop.f32.mrf.mxu0
  %v1748 = vadd.f32 %v1659, %v1747
  %v1749 = vpop.f32.mrf.mxu0
  %v1750 = vadd.f32 %v1661, %v1749
  %1751 = vmatmul.bf16.gmra.mxu0 %v1016
  %v1752 = vpop.f32.mrf.mxu0
  %v1753 = vadd.f32 %v1664, %v1752
  %v1754 = vpop.f32.mrf.mxu0
  %v1755 = vadd.f32 %v1666, %v1754
  %1756 = vmatmul.bf16.gmra.mxu0 %v1020
  %v1757 = vpop.f32.mrf.mxu0
  %v1758 = vadd.f32 %v1669, %v1757
  %v1759 = vpop.f32.mrf.mxu0
  %v1760 = vadd.f32 %v1671, %v1759
  %1761 = vmatmul.bf16.gmra.mxu0 %v1024
  %v1762 = vpop.f32.mrf.mxu0
  %v1763 = vadd.f32 %v1674, %v1762
  %v1764 = vpop.f32.mrf.mxu0
  %v1765 = vadd.f32 %v1676, %v1764
  %1766 = vmatmul.bf16.gmra.mxu0 %v1028
  %v1767 = vpop.f32.mrf.mxu0
  %v1768 = vadd.f32 %v1679, %v1767
  %v1769 = vpop.f32.mrf.mxu0
  %v1770 = vadd.f32 %v1681, %v1769
  %1771 = vmatmul.bf16.gmra.mxu0 %v1032
  %v1772 = vpop.f32.mrf.mxu0
  %v1773 = vadd.f32 %v1684, %v1772
  %v1774 = vpop.f32.mrf.mxu0
  %v1775 = vadd.f32 %v1686, %v1774
  %1776 = vmatmul.bf16.gmra.mxu0 %v1036
  %v1777 = vpop.f32.mrf.mxu0
  %v1778 = vadd.f32 %v1689, %v1777
  %v1779 = vpop.f32.mrf.mxu0
  %v1780 = vadd.f32 %v1691, %v1779
  %1781 = vmatmul.bf16.gmra.mxu0 %v1040
  %v1782 = vpop.f32.mrf.mxu0
  %v1783 = vadd.f32 %v1694, %v1782
  %v1784 = vpop.f32.mrf.mxu0
  %v1785 = vadd.f32 %v1696, %v1784
  %1786 = vdwg.mxu0
  %1787 = vmatpush.bf16.msra.mxu0 %v1318
  %1788 = vmatpush.bf16.msra.mxu0 %v1316
  %1789 = vmatpush.bf16.msra.mxu0 %v1314
  %1790 = vmatpush.bf16.msra.mxu0 %v1312
  %1791 = vmatpush.bf16.msra.mxu0 %v1310
  %1792 = vmatpush.bf16.msra.mxu0 %v1308
  %1793 = vmatpush.bf16.msra.mxu0 %v1306
  %1794 = vmatpush.bf16.msra.mxu0 %v1304
  %1795 = vmatmul.bf16.gmra.mxu0 %v977
  %v1796 = vpop.f32.mrf.mxu0
  %v1797 = vadd.f32 %v1108, %v1796
  %v1798 = vpop.f32.mrf.mxu0
  %v1799 = vadd.f32 %v1108, %v1798
  %1800 = vmatmul.bf16.gmra.mxu0 %v981
  %v1801 = vpop.f32.mrf.mxu0
  %v1802 = vadd.f32 %v1108, %v1801
  %v1803 = vpop.f32.mrf.mxu0
  %v1804 = vadd.f32 %v1108, %v1803
  %1805 = vmatmul.bf16.gmra.mxu0 %v985
  %v1806 = vpop.f32.mrf.mxu0
  %v1807 = vadd.f32 %v1108, %v1806
  %v1808 = vpop.f32.mrf.mxu0
  %v1809 = vadd.f32 %v1108, %v1808
  %1810 = vmatmul.bf16.gmra.mxu0 %v989
  %v1811 = vpop.f32.mrf.mxu0
  %v1812 = vadd.f32 %v1108, %v1811
  %v1813 = vpop.f32.mrf.mxu0
  %v1814 = vadd.f32 %v1108, %v1813
  %1815 = vmatmul.bf16.gmra.mxu0 %v993
  %v1816 = vpop.f32.mrf.mxu0
  %v1817 = vadd.f32 %v1108, %v1816
  %v1818 = vpop.f32.mrf.mxu0
  %v1819 = vadd.f32 %v1108, %v1818
  %1820 = vmatmul.bf16.gmra.mxu0 %v997
  %v1821 = vpop.f32.mrf.mxu0
  %v1822 = vadd.f32 %v1108, %v1821
  %v1823 = vpop.f32.mrf.mxu0
  %v1824 = vadd.f32 %v1108, %v1823
  %1825 = vmatmul.bf16.gmra.mxu0 %v1001
  %v1826 = vpop.f32.mrf.mxu0
  %v1827 = vadd.f32 %v1108, %v1826
  %v1828 = vpop.f32.mrf.mxu0
  %v1829 = vadd.f32 %v1108, %v1828
  %1830 = vmatmul.bf16.gmra.mxu0 %v1005
  %v1831 = vpop.f32.mrf.mxu0
  %v1832 = vadd.f32 %v1108, %v1831
  %v1833 = vpop.f32.mrf.mxu0
  %v1834 = vadd.f32 %v1108, %v1833
  %1835 = vmatmul.bf16.gmra.mxu0 %v1009
  %v1836 = vpop.f32.mrf.mxu0
  %v1837 = vadd.f32 %v1108, %v1836
  %v1838 = vpop.f32.mrf.mxu0
  %v1839 = vadd.f32 %v1108, %v1838
  %1840 = vmatmul.bf16.gmra.mxu0 %v1013
  %v1841 = vpop.f32.mrf.mxu0
  %v1842 = vadd.f32 %v1108, %v1841
  %v1843 = vpop.f32.mrf.mxu0
  %v1844 = vadd.f32 %v1108, %v1843
  %1845 = vmatmul.bf16.gmra.mxu0 %v1017
  %v1846 = vpop.f32.mrf.mxu0
  %v1847 = vadd.f32 %v1108, %v1846
  %v1848 = vpop.f32.mrf.mxu0
  %v1849 = vadd.f32 %v1108, %v1848
  %1850 = vmatmul.bf16.gmra.mxu0 %v1021
  %v1851 = vpop.f32.mrf.mxu0
  %v1852 = vadd.f32 %v1108, %v1851
  %v1853 = vpop.f32.mrf.mxu0
  %v1854 = vadd.f32 %v1108, %v1853
  %1855 = vmatmul.bf16.gmra.mxu0 %v1025
  %v1856 = vpop.f32.mrf.mxu0
  %v1857 = vadd.f32 %v1108, %v1856
  %v1858 = vpop.f32.mrf.mxu0
  %v1859 = vadd.f32 %v1108, %v1858
  %1860 = vmatmul.bf16.gmra.mxu0 %v1029
  %v1861 = vpop.f32.mrf.mxu0
  %v1862 = vadd.f32 %v1108, %v1861
  %v1863 = vpop.f32.mrf.mxu0
  %v1864 = vadd.f32 %v1108, %v1863
  %1865 = vmatmul.bf16.gmra.mxu0 %v1033
  %v1866 = vpop.f32.mrf.mxu0
  %v1867 = vadd.f32 %v1108, %v1866
  %v1868 = vpop.f32.mrf.mxu0
  %v1869 = vadd.f32 %v1108, %v1868
  %1870 = vmatmul.bf16.gmra.mxu0 %v1037
  %v1871 = vpop.f32.mrf.mxu0
  %v1872 = vadd.f32 %v1108, %v1871
  %v1873 = vpop.f32.mrf.mxu0
  %v1874 = vadd.f32 %v1108, %v1873
  %1875 = vdwg.mxu0
  %1876 = vmatpush.bf16.msra.mxu0 %v1334
  %1877 = vmatpush.bf16.msra.mxu0 %v1332
  %1878 = vmatpush.bf16.msra.mxu0 %v1330
  %1879 = vmatpush.bf16.msra.mxu0 %v1328
  %1880 = vmatpush.bf16.msra.mxu0 %v1326
  %1881 = vmatpush.bf16.msra.mxu0 %v1324
  %1882 = vmatpush.bf16.msra.mxu0 %v1322
  %1883 = vmatpush.bf16.msra.mxu0 %v1320
  %1884 = vmatmul.bf16.gmra.mxu0 %v978
  %v1885 = vpop.f32.mrf.mxu0
  %v1886 = vadd.f32 %v1797, %v1885
  %v1887 = vpop.f32.mrf.mxu0
  %v1888 = vadd.f32 %v1799, %v1887
  %1889 = vmatmul.bf16.gmra.mxu0 %v982
  %v1890 = vpop.f32.mrf.mxu0
  %v1891 = vadd.f32 %v1802, %v1890
  %v1892 = vpop.f32.mrf.mxu0
  %v1893 = vadd.f32 %v1804, %v1892
  %1894 = vmatmul.bf16.gmra.mxu0 %v986
  %v1895 = vpop.f32.mrf.mxu0
  %v1896 = vadd.f32 %v1807, %v1895
  %v1897 = vpop.f32.mrf.mxu0
  %v1898 = vadd.f32 %v1809, %v1897
  %1899 = vmatmul.bf16.gmra.mxu0 %v990
  %v1900 = vpop.f32.mrf.mxu0
  %v1901 = vadd.f32 %v1812, %v1900
  %v1902 = vpop.f32.mrf.mxu0
  %v1903 = vadd.f32 %v1814, %v1902
  %1904 = vmatmul.bf16.gmra.mxu0 %v994
  %v1905 = vpop.f32.mrf.mxu0
  %v1906 = vadd.f32 %v1817, %v1905
  %v1907 = vpop.f32.mrf.mxu0
  %v1908 = vadd.f32 %v1819, %v1907
  %1909 = vmatmul.bf16.gmra.mxu0 %v998
  %v1910 = vpop.f32.mrf.mxu0
  %v1911 = vadd.f32 %v1822, %v1910
  %v1912 = vpop.f32.mrf.mxu0
  %v1913 = vadd.f32 %v1824, %v1912
  %1914 = vmatmul.bf16.gmra.mxu0 %v1002
  %v1915 = vpop.f32.mrf.mxu0
  %v1916 = vadd.f32 %v1827, %v1915
  %v1917 = vpop.f32.mrf.mxu0
  %v1918 = vadd.f32 %v1829, %v1917
  %1919 = vmatmul.bf16.gmra.mxu0 %v1006
  %v1920 = vpop.f32.mrf.mxu0
  %v1921 = vadd.f32 %v1832, %v1920
  %v1922 = vpop.f32.mrf.mxu0
  %v1923 = vadd.f32 %v1834, %v1922
  %1924 = vmatmul.bf16.gmra.mxu0 %v1010
  %v1925 = vpop.f32.mrf.mxu0
  %v1926 = vadd.f32 %v1837, %v1925
  %v1927 = vpop.f32.mrf.mxu0
  %v1928 = vadd.f32 %v1839, %v1927
  %1929 = vmatmul.bf16.gmra.mxu0 %v1014
  %v1930 = vpop.f32.mrf.mxu0
  %v1931 = vadd.f32 %v1842, %v1930
  %v1932 = vpop.f32.mrf.mxu0
  %v1933 = vadd.f32 %v1844, %v1932
  %1934 = vmatmul.bf16.gmra.mxu0 %v1018
  %v1935 = vpop.f32.mrf.mxu0
  %v1936 = vadd.f32 %v1847, %v1935
  %v1937 = vpop.f32.mrf.mxu0
  %v1938 = vadd.f32 %v1849, %v1937
  %1939 = vmatmul.bf16.gmra.mxu0 %v1022
  %v1940 = vpop.f32.mrf.mxu0
  %v1941 = vadd.f32 %v1852, %v1940
  %v1942 = vpop.f32.mrf.mxu0
  %v1943 = vadd.f32 %v1854, %v1942
  %1944 = vmatmul.bf16.gmra.mxu0 %v1026
  %v1945 = vpop.f32.mrf.mxu0
  %v1946 = vadd.f32 %v1857, %v1945
  %v1947 = vpop.f32.mrf.mxu0
  %v1948 = vadd.f32 %v1859, %v1947
  %1949 = vmatmul.bf16.gmra.mxu0 %v1030
  %v1950 = vpop.f32.mrf.mxu0
  %v1951 = vadd.f32 %v1862, %v1950
  %v1952 = vpop.f32.mrf.mxu0
  %v1953 = vadd.f32 %v1864, %v1952
  %1954 = vmatmul.bf16.gmra.mxu0 %v1034
  %v1955 = vpop.f32.mrf.mxu0
  %v1956 = vadd.f32 %v1867, %v1955
  %v1957 = vpop.f32.mrf.mxu0
  %v1958 = vadd.f32 %v1869, %v1957
  %1959 = vmatmul.bf16.gmra.mxu0 %v1038
  %v1960 = vpop.f32.mrf.mxu0
  %v1961 = vadd.f32 %v1872, %v1960
  %v1962 = vpop.f32.mrf.mxu0
  %v1963 = vadd.f32 %v1874, %v1962
  %1964 = vdwg.mxu0
  %1965 = vmatpush.bf16.msra.mxu0 %v1350
  %1966 = vmatpush.bf16.msra.mxu0 %v1348
  %1967 = vmatpush.bf16.msra.mxu0 %v1346
  %1968 = vmatpush.bf16.msra.mxu0 %v1344
  %1969 = vmatpush.bf16.msra.mxu0 %v1342
  %1970 = vmatpush.bf16.msra.mxu0 %v1340
  %1971 = vmatpush.bf16.msra.mxu0 %v1338
  %1972 = vmatpush.bf16.msra.mxu0 %v1336
  %1973 = vmatmul.bf16.gmra.mxu0 %v979
  %v1974 = vpop.f32.mrf.mxu0
  %v1975 = vadd.f32 %v1886, %v1974
  %v1976 = vpop.f32.mrf.mxu0
  %v1977 = vadd.f32 %v1888, %v1976
  %1978 = vmatmul.bf16.gmra.mxu0 %v983
  %v1979 = vpop.f32.mrf.mxu0
  %v1980 = vadd.f32 %v1891, %v1979
  %v1981 = vpop.f32.mrf.mxu0
  %v1982 = vadd.f32 %v1893, %v1981
  %1983 = vmatmul.bf16.gmra.mxu0 %v987
  %v1984 = vpop.f32.mrf.mxu0
  %v1985 = vadd.f32 %v1896, %v1984
  %v1986 = vpop.f32.mrf.mxu0
  %v1987 = vadd.f32 %v1898, %v1986
  %1988 = vmatmul.bf16.gmra.mxu0 %v991
  %v1989 = vpop.f32.mrf.mxu0
  %v1990 = vadd.f32 %v1901, %v1989
  %v1991 = vpop.f32.mrf.mxu0
  %v1992 = vadd.f32 %v1903, %v1991
  %1993 = vmatmul.bf16.gmra.mxu0 %v995
  %v1994 = vpop.f32.mrf.mxu0
  %v1995 = vadd.f32 %v1906, %v1994
  %v1996 = vpop.f32.mrf.mxu0
  %v1997 = vadd.f32 %v1908, %v1996
  %1998 = vmatmul.bf16.gmra.mxu0 %v999
  %v1999 = vpop.f32.mrf.mxu0
  %v2000 = vadd.f32 %v1911, %v1999
  %v2001 = vpop.f32.mrf.mxu0
  %v2002 = vadd.f32 %v1913, %v2001
  %2003 = vmatmul.bf16.gmra.mxu0 %v1003
  %v2004 = vpop.f32.mrf.mxu0
  %v2005 = vadd.f32 %v1916, %v2004
  %v2006 = vpop.f32.mrf.mxu0
  %v2007 = vadd.f32 %v1918, %v2006
  %2008 = vmatmul.bf16.gmra.mxu0 %v1007
  %v2009 = vpop.f32.mrf.mxu0
  %v2010 = vadd.f32 %v1921, %v2009
  %v2011 = vpop.f32.mrf.mxu0
  %v2012 = vadd.f32 %v1923, %v2011
  %2013 = vmatmul.bf16.gmra.mxu0 %v1011
  %v2014 = vpop.f32.mrf.mxu0
  %v2015 = vadd.f32 %v1926, %v2014
  %v2016 = vpop.f32.mrf.mxu0
  %v2017 = vadd.f32 %v1928, %v2016
  %2018 = vmatmul.bf16.gmra.mxu0 %v1015
  %v2019 = vpop.f32.mrf.mxu0
  %v2020 = vadd.f32 %v1931, %v2019
  %v2021 = vpop.f32.mrf.mxu0
  %v2022 = vadd.f32 %v1933, %v2021
  %2023 = vmatmul.bf16.gmra.mxu0 %v1019
  %v2024 = vpop.f32.mrf.mxu0
  %v2025 = vadd.f32 %v1936, %v2024
  %v2026 = vpop.f32.mrf.mxu0
  %v2027 = vadd.f32 %v1938, %v2026
  %2028 = vmatmul.bf16.gmra.mxu0 %v1023
  %v2029 = vpop.f32.mrf.mxu0
  %v2030 = vadd.f32 %v1941, %v2029
  %v2031 = vpop.f32.mrf.mxu0
  %v2032 = vadd.f32 %v1943, %v2031
  %2033 = vmatmul.bf16.gmra.mxu0 %v1027
  %v2034 = vpop.f32.mrf.mxu0
  %v2035 = vadd.f32 %v1946, %v2034
  %v2036 = vpop.f32.mrf.mxu0
  %v2037 = vadd.f32 %v1948, %v2036
  %2038 = vmatmul.bf16.gmra.mxu0 %v1031
  %v2039 = vpop.f32.mrf.mxu0
  %v2040 = vadd.f32 %v1951, %v2039
  %v2041 = vpop.f32.mrf.mxu0
  %v2042 = vadd.f32 %v1953, %v2041
  %2043 = vmatmul.bf16.gmra.mxu0 %v1035
  %v2044 = vpop.f32.mrf.mxu0
  %v2045 = vadd.f32 %v1956, %v2044
  %v2046 = vpop.f32.mrf.mxu0
  %v2047 = vadd.f32 %v1958, %v2046
  %2048 = vmatmul.bf16.gmra.mxu0 %v1039
  %v2049 = vpop.f32.mrf.mxu0
  %v2050 = vadd.f32 %v1961, %v2049
  %v2051 = vpop.f32.mrf.mxu0
  %v2052 = vadd.f32 %v1963, %v2051
  %2053 = vdwg.mxu0
  %2054 = vmatpush.bf16.msra.mxu0 %v1366
  %2055 = vmatpush.bf16.msra.mxu0 %v1364
  %2056 = vmatpush.bf16.msra.mxu0 %v1362
  %2057 = vmatpush.bf16.msra.mxu0 %v1360
  %2058 = vmatpush.bf16.msra.mxu0 %v1358
  %2059 = vmatpush.bf16.msra.mxu0 %v1356
  %2060 = vmatpush.bf16.msra.mxu0 %v1354
  %2061 = vmatpush.bf16.msra.mxu0 %v1352
  %2062 = vmatmul.bf16.gmra.mxu0 %v980
  %v2063 = vpop.f32.mrf.mxu0
  %v2064 = vadd.f32 %v1975, %v2063
  %v2065 = vpop.f32.mrf.mxu0
  %v2066 = vadd.f32 %v1977, %v2065
  %2067 = vmatmul.bf16.gmra.mxu0 %v984
  %v2068 = vpop.f32.mrf.mxu0
  %v2069 = vadd.f32 %v1980, %v2068
  %v2070 = vpop.f32.mrf.mxu0
  %v2071 = vadd.f32 %v1982, %v2070
  %2072 = vmatmul.bf16.gmra.mxu0 %v988
  %v2073 = vpop.f32.mrf.mxu0
  %v2074 = vadd.f32 %v1985, %v2073
  %v2075 = vpop.f32.mrf.mxu0
  %v2076 = vadd.f32 %v1987, %v2075
  %2077 = vmatmul.bf16.gmra.mxu0 %v992
  %v2078 = vpop.f32.mrf.mxu0
  %v2079 = vadd.f32 %v1990, %v2078
  %v2080 = vpop.f32.mrf.mxu0
  %v2081 = vadd.f32 %v1992, %v2080
  %2082 = vmatmul.bf16.gmra.mxu0 %v996
  %v2083 = vpop.f32.mrf.mxu0
  %v2084 = vadd.f32 %v1995, %v2083
  %v2085 = vpop.f32.mrf.mxu0
  %v2086 = vadd.f32 %v1997, %v2085
  %2087 = vmatmul.bf16.gmra.mxu0 %v1000
  %v2088 = vpop.f32.mrf.mxu0
  %v2089 = vadd.f32 %v2000, %v2088
  %v2090 = vpop.f32.mrf.mxu0
  %v2091 = vadd.f32 %v2002, %v2090
  %2092 = vmatmul.bf16.gmra.mxu0 %v1004
  %v2093 = vpop.f32.mrf.mxu0
  %v2094 = vadd.f32 %v2005, %v2093
  %v2095 = vpop.f32.mrf.mxu0
  %v2096 = vadd.f32 %v2007, %v2095
  %2097 = vmatmul.bf16.gmra.mxu0 %v1008
  %v2098 = vpop.f32.mrf.mxu0
  %v2099 = vadd.f32 %v2010, %v2098
  %v2100 = vpop.f32.mrf.mxu0
  %v2101 = vadd.f32 %v2012, %v2100
  %2102 = vmatmul.bf16.gmra.mxu0 %v1012
  %v2103 = vpop.f32.mrf.mxu0
  %v2104 = vadd.f32 %v2015, %v2103
  %v2105 = vpop.f32.mrf.mxu0
  %v2106 = vadd.f32 %v2017, %v2105
  %2107 = vmatmul.bf16.gmra.mxu0 %v1016
  %v2108 = vpop.f32.mrf.mxu0
  %v2109 = vadd.f32 %v2020, %v2108
  %v2110 = vpop.f32.mrf.mxu0
  %v2111 = vadd.f32 %v2022, %v2110
  %2112 = vmatmul.bf16.gmra.mxu0 %v1020
  %v2113 = vpop.f32.mrf.mxu0
  %v2114 = vadd.f32 %v2025, %v2113
  %v2115 = vpop.f32.mrf.mxu0
  %v2116 = vadd.f32 %v2027, %v2115
  %2117 = vmatmul.bf16.gmra.mxu0 %v1024
  %v2118 = vpop.f32.mrf.mxu0
  %v2119 = vadd.f32 %v2030, %v2118
  %v2120 = vpop.f32.mrf.mxu0
  %v2121 = vadd.f32 %v2032, %v2120
  %2122 = vmatmul.bf16.gmra.mxu0 %v1028
  %v2123 = vpop.f32.mrf.mxu0
  %v2124 = vadd.f32 %v2035, %v2123
  %v2125 = vpop.f32.mrf.mxu0
  %v2126 = vadd.f32 %v2037, %v2125
  %2127 = vmatmul.bf16.gmra.mxu0 %v1032
  %v2128 = vpop.f32.mrf.mxu0
  %v2129 = vadd.f32 %v2040, %v2128
  %v2130 = vpop.f32.mrf.mxu0
  %v2131 = vadd.f32 %v2042, %v2130
  %2132 = vmatmul.bf16.gmra.mxu0 %v1036
  %v2133 = vpop.f32.mrf.mxu0
  %v2134 = vadd.f32 %v2045, %v2133
  %v2135 = vpop.f32.mrf.mxu0
  %v2136 = vadd.f32 %v2047, %v2135
  %2137 = vmatmul.bf16.gmra.mxu0 %v1040
  %v2138 = vpop.f32.mrf.mxu0
  %v2139 = vadd.f32 %v2050, %v2138
  %v2140 = vpop.f32.mrf.mxu0
  %v2141 = vadd.f32 %v2052, %v2140
  %2142 = vdwg.mxu0
  %vm2143 = vcmp.gt.f32.partialorder %v1708, 0.0
  %vm2144 = vcmp.gt.f32.partialorder %v2064, 0.0
  %vm2145 = vcmp.gt.f32.partialorder %v1710, 0.0
  %vm2146 = vcmp.gt.f32.partialorder %v2066, 0.0
  %vm2147 = vcmp.gt.f32.partialorder %v1713, 0.0
  %vm2148 = vcmp.gt.f32.partialorder %v2069, 0.0
  %vm2149 = vcmp.gt.f32.partialorder %v1715, 0.0
  %vm2150 = vcmp.gt.f32.partialorder %v2071, 0.0
  %vm2151 = vcmp.gt.f32.partialorder %v1718, 0.0
  %vm2152 = vcmp.gt.f32.partialorder %v2074, 0.0
  %vm2153 = vcmp.gt.f32.partialorder %v1720, 0.0
  %vm2154 = vcmp.gt.f32.partialorder %v2076, 0.0
  %vm2155 = vcmp.gt.f32.partialorder %v1723, 0.0
  %vm2156 = vcmp.gt.f32.partialorder %v2079, 0.0
  %vm2157 = vcmp.gt.f32.partialorder %v1725, 0.0
  %vm2158 = vcmp.gt.f32.partialorder %v2081, 0.0
  %vm2159 = vcmp.gt.f32.partialorder %v1728, 0.0
  %vm2160 = vcmp.gt.f32.partialorder %v2084, 0.0
  %vm2161 = vcmp.gt.f32.partialorder %v1730, 0.0
  %vm2162 = vcmp.gt.f32.partialorder %v2086, 0.0
  %vm2163 = vcmp.gt.f32.partialorder %v1733, 0.0
  %vm2164 = vcmp.gt.f32.partialorder %v2089, 0.0
  %vm2165 = vcmp.gt.f32.partialorder %v1735, 0.0
  %vm2166 = vcmp.gt.f32.partialorder %v2091, 0.0
  %vm2167 = vcmp.gt.f32.partialorder %v1738, 0.0
  %vm2168 = vcmp.gt.f32.partialorder %v2094, 0.0
  %vm2169 = vcmp.gt.f32.partialorder %v1740, 0.0
  %vm2170 = vcmp.gt.f32.partialorder %v2096, 0.0
  %vm2171 = vcmp.gt.f32.partialorder %v1743, 0.0
  %vm2172 = vcmp.gt.f32.partialorder %v2099, 0.0
  %vm2173 = vcmp.gt.f32.partialorder %v1745, 0.0
  %vm2174 = vcmp.gt.f32.partialorder %v2101, 0.0
  %vm2175 = vcmp.gt.f32.partialorder %v1748, 0.0
  %vm2176 = vcmp.gt.f32.partialorder %v2104, 0.0
  %vm2177 = vcmp.gt.f32.partialorder %v1750, 0.0
  %vm2178 = vcmp.gt.f32.partialorder %v2106, 0.0
  %vm2179 = vcmp.gt.f32.partialorder %v1753, 0.0
  %vm2180 = vcmp.gt.f32.partialorder %v2109, 0.0
  %vm2181 = vcmp.gt.f32.partialorder %v1755, 0.0
  %vm2182 = vcmp.gt.f32.partialorder %v2111, 0.0
  %vm2183 = vcmp.gt.f32.partialorder %v1758, 0.0
  %vm2184 = vcmp.gt.f32.partialorder %v2114, 0.0
  %vm2185 = vcmp.gt.f32.partialorder %v1760, 0.0
  %vm2186 = vcmp.gt.f32.partialorder %v2116, 0.0
  %vm2187 = vcmp.gt.f32.partialorder %v1763, 0.0
  %vm2188 = vcmp.gt.f32.partialorder %v2119, 0.0
  %vm2189 = vcmp.gt.f32.partialorder %v1765, 0.0
  %vm2190 = vcmp.gt.f32.partialorder %v2121, 0.0
  %vm2191 = vcmp.gt.f32.partialorder %v1768, 0.0
  %vm2192 = vcmp.gt.f32.partialorder %v2124, 0.0
  %vm2193 = vcmp.gt.f32.partialorder %v1770, 0.0
  %vm2194 = vcmp.gt.f32.partialorder %v2126, 0.0
  %vm2195 = vcmp.gt.f32.partialorder %v1773, 0.0
  %vm2196 = vcmp.gt.f32.partialorder %v2129, 0.0
  %vm2197 = vcmp.gt.f32.partialorder %v1775, 0.0
  %vm2198 = vcmp.gt.f32.partialorder %v2131, 0.0
  %vm2199 = vcmp.gt.f32.partialorder %v1778, 0.0
  %vm2200 = vcmp.gt.f32.partialorder %v2134, 0.0
  %vm2201 = vcmp.gt.f32.partialorder %v1780, 0.0
  %vm2202 = vcmp.gt.f32.partialorder %v2136, 0.0
  %vm2203 = vcmp.gt.f32.partialorder %v1783, 0.0
  %vm2204 = vcmp.gt.f32.partialorder %v2139, 0.0
  %vm2205 = vcmp.gt.f32.partialorder %v1785, 0.0
  %vm2206 = vcmp.gt.f32.partialorder %v2141, 0.0
  %v2207 = vmul.f32 %v1708, 0.2
  %v2208 = vmul.f32 %v2064, 0.2
  %v2209 = vmul.f32 %v1710, 0.2
  %v2210 = vmul.f32 %v2066, 0.2
  %v2211 = vmul.f32 %v1713, 0.2
  %v2212 = vmul.f32 %v2069, 0.2
  %v2213 = vmul.f32 %v1715, 0.2
  %v2214 = vmul.f32 %v2071, 0.2
  %v2215 = vmul.f32 %v1718, 0.2
  %v2216 = vmul.f32 %v2074, 0.2
  %v2217 = vmul.f32 %v1720, 0.2
  %v2218 = vmul.f32 %v2076, 0.2
  %v2219 = vmul.f32 %v1723, 0.2
  %v2220 = vmul.f32 %v2079, 0.2
  %v2221 = vmul.f32 %v1725, 0.2
  %v2222 = vmul.f32 %v2081, 0.2
  %v2223 = vmul.f32 %v1728, 0.2
  %v2224 = vmul.f32 %v2084, 0.2
  %v2225 = vmul.f32 %v1730, 0.2
  %v2226 = vmul.f32 %v2086, 0.2
  %v2227 = vmul.f32 %v1733, 0.2
  %v2228 = vmul.f32 %v2089, 0.2
  %v2229 = vmul.f32 %v1735, 0.2
  %v2230 = vmul.f32 %v2091, 0.2
  %v2231 = vmul.f32 %v1738, 0.2
  %v2232 = vmul.f32 %v2094, 0.2
  %v2233 = vmul.f32 %v1740, 0.2
  %v2234 = vmul.f32 %v2096, 0.2
  %v2235 = vmul.f32 %v1743, 0.2
  %v2236 = vmul.f32 %v2099, 0.2
  %v2237 = vmul.f32 %v1745, 0.2
  %v2238 = vmul.f32 %v2101, 0.2
  %v2239 = vmul.f32 %v1748, 0.2
  %v2240 = vmul.f32 %v2104, 0.2
  %v2241 = vmul.f32 %v1750, 0.2
  %v2242 = vmul.f32 %v2106, 0.2
  %v2243 = vmul.f32 %v1753, 0.2
  %v2244 = vmul.f32 %v2109, 0.2
  %v2245 = vmul.f32 %v1755, 0.2
  %v2246 = vmul.f32 %v2111, 0.2
  %v2247 = vmul.f32 %v1758, 0.2
  %v2248 = vmul.f32 %v2114, 0.2
  %v2249 = vmul.f32 %v1760, 0.2
  %v2250 = vmul.f32 %v2116, 0.2
  %v2251 = vmul.f32 %v1763, 0.2
  %v2252 = vmul.f32 %v2119, 0.2
  %v2253 = vmul.f32 %v1765, 0.2
  %v2254 = vmul.f32 %v2121, 0.2
  %v2255 = vmul.f32 %v1768, 0.2
  %v2256 = vmul.f32 %v2124, 0.2
  %v2257 = vmul.f32 %v1770, 0.2
  %v2258 = vmul.f32 %v2126, 0.2
  %v2259 = vmul.f32 %v1773, 0.2
  %v2260 = vmul.f32 %v2129, 0.2
  %v2261 = vmul.f32 %v1775, 0.2
  %v2262 = vmul.f32 %v2131, 0.2
  %v2263 = vmul.f32 %v1778, 0.2
  %v2264 = vmul.f32 %v2134, 0.2
  %v2265 = vmul.f32 %v1780, 0.2
  %v2266 = vmul.f32 %v2136, 0.2
  %v2267 = vmul.f32 %v1783, 0.2
  %v2268 = vmul.f32 %v2139, 0.2
  %v2269 = vmul.f32 %v1785, 0.2
  %v2270 = vmul.f32 %v2141, 0.2
  %v2271 = vsel %vm2143, %v1708, %v2207
  %v2272 = vsel %vm2144, %v2064, %v2208
  %v2273 = vsel %vm2145, %v1710, %v2209
  %v2274 = vsel %vm2146, %v2066, %v2210
  %v2275 = vsel %vm2147, %v1713, %v2211
  %v2276 = vsel %vm2148, %v2069, %v2212
  %v2277 = vsel %vm2149, %v1715, %v2213
  %v2278 = vsel %vm2150, %v2071, %v2214
  %v2279 = vsel %vm2151, %v1718, %v2215
  %v2280 = vsel %vm2152, %v2074, %v2216
  %v2281 = vsel %vm2153, %v1720, %v2217
  %v2282 = vsel %vm2154, %v2076, %v2218
  %v2283 = vsel %vm2155, %v1723, %v2219
  %v2284 = vsel %vm2156, %v2079, %v2220
  %v2285 = vsel %vm2157, %v1725, %v2221
  %v2286 = vsel %vm2158, %v2081, %v2222
  %v2287 = vsel %vm2159, %v1728, %v2223
  %v2288 = vsel %vm2160, %v2084, %v2224
  %v2289 = vsel %vm2161, %v1730, %v2225
  %v2290 = vsel %vm2162, %v2086, %v2226
  %v2291 = vsel %vm2163, %v1733, %v2227
  %v2292 = vsel %vm2164, %v2089, %v2228
  %v2293 = vsel %vm2165, %v1735, %v2229
  %v2294 = vsel %vm2166, %v2091, %v2230
  %v2295 = vsel %vm2167, %v1738, %v2231
  %v2296 = vsel %vm2168, %v2094, %v2232
  %v2297 = vsel %vm2169, %v1740, %v2233
  %v2298 = vsel %vm2170, %v2096, %v2234
  %v2299 = vsel %vm2171, %v1743, %v2235
  %v2300 = vsel %vm2172, %v2099, %v2236
  %v2301 = vsel %vm2173, %v1745, %v2237
  %v2302 = vsel %vm2174, %v2101, %v2238
  %v2303 = vsel %vm2175, %v1748, %v2239
  %v2304 = vsel %vm2176, %v2104, %v2240
  %v2305 = vsel %vm2177, %v1750, %v2241
  %v2306 = vsel %vm2178, %v2106, %v2242
  %v2307 = vsel %vm2179, %v1753, %v2243
  %v2308 = vsel %vm2180, %v2109, %v2244
  %v2309 = vsel %vm2181, %v1755, %v2245
  %v2310 = vsel %vm2182, %v2111, %v2246
  %v2311 = vsel %vm2183, %v1758, %v2247
  %v2312 = vsel %vm2184, %v2114, %v2248
  %v2313 = vsel %vm2185, %v1760, %v2249
  %v2314 = vsel %vm2186, %v2116, %v2250
  %v2315 = vsel %vm2187, %v1763, %v2251
  %v2316 = vsel %vm2188, %v2119, %v2252
  %v2317 = vsel %vm2189, %v1765, %v2253
  %v2318 = vsel %vm2190, %v2121, %v2254
  %v2319 = vsel %vm2191, %v1768, %v2255
  %v2320 = vsel %vm2192, %v2124, %v2256
  %v2321 = vsel %vm2193, %v1770, %v2257
  %v2322 = vsel %vm2194, %v2126, %v2258
  %v2323 = vsel %vm2195, %v1773, %v2259
  %v2324 = vsel %vm2196, %v2129, %v2260
  %v2325 = vsel %vm2197, %v1775, %v2261
  %v2326 = vsel %vm2198, %v2131, %v2262
  %v2327 = vsel %vm2199, %v1778, %v2263
  %v2328 = vsel %vm2200, %v2134, %v2264
  %v2329 = vsel %vm2201, %v1780, %v2265
  %v2330 = vsel %vm2202, %v2136, %v2266
  %v2331 = vsel %vm2203, %v1783, %v2267
  %v2332 = vsel %vm2204, %v2139, %v2268
  %v2333 = vsel %vm2205, %v1785, %v2269
  %v2334 = vsel %vm2206, %v2141, %v2270
  %v2335 = vpack.c.bf16 %v2273, %v2271
  %v2336 = vpack.c.bf16 %v2274, %v2272
  %v2337 = vpack.c.bf16 %v2277, %v2275
  %v2338 = vpack.c.bf16 %v2278, %v2276
  %v2339 = vpack.c.bf16 %v2281, %v2279
  %v2340 = vpack.c.bf16 %v2282, %v2280
  %v2341 = vpack.c.bf16 %v2285, %v2283
  %v2342 = vpack.c.bf16 %v2286, %v2284
  %v2343 = vpack.c.bf16 %v2289, %v2287
  %v2344 = vpack.c.bf16 %v2290, %v2288
  %v2345 = vpack.c.bf16 %v2293, %v2291
  %v2346 = vpack.c.bf16 %v2294, %v2292
  %v2347 = vpack.c.bf16 %v2297, %v2295
  %v2348 = vpack.c.bf16 %v2298, %v2296
  %v2349 = vpack.c.bf16 %v2301, %v2299
  %v2350 = vpack.c.bf16 %v2302, %v2300
  %v2351 = vpack.c.bf16 %v2305, %v2303
  %v2352 = vpack.c.bf16 %v2306, %v2304
  %v2353 = vpack.c.bf16 %v2309, %v2307
  %v2354 = vpack.c.bf16 %v2310, %v2308
  %v2355 = vpack.c.bf16 %v2313, %v2311
  %v2356 = vpack.c.bf16 %v2314, %v2312
  %v2357 = vpack.c.bf16 %v2317, %v2315
  %v2358 = vpack.c.bf16 %v2318, %v2316
  %v2359 = vpack.c.bf16 %v2321, %v2319
  %v2360 = vpack.c.bf16 %v2322, %v2320
  %v2361 = vpack.c.bf16 %v2325, %v2323
  %v2362 = vpack.c.bf16 %v2326, %v2324
  %v2363 = vpack.c.bf16 %v2329, %v2327
  %v2364 = vpack.c.bf16 %v2330, %v2328
  %v2365 = vpack.c.bf16 %v2333, %v2331
  %v2366 = vpack.c.bf16 %v2334, %v2332
  %v2367 = vld [vmem:[%s5] sm:$0xf]
  %v2368 = vld [vmem:[%s5 + $0x4] sm:$0xf]
  %v2369 = vld [vmem:[%s5 + $0x8] sm:$0xf]
  %v2370 = vld [vmem:[%s5 + $0xc] sm:$0xf]
  %v2371 = vld [vmem:[%s5 + $0x10] sm:$0xf]
  %v2372 = vld [vmem:[%s5 + $0x14] sm:$0xf]
  %v2373 = vld [vmem:[%s5 + $0x18] sm:$0xf]
  %v2374 = vld [vmem:[%s5 + $0x1c] sm:$0xf]
  %v2375 = vld [vmem:[%s5 + $0x20] sm:$0xf]
  %v2376 = vld [vmem:[%s5 + $0x24] sm:$0xf]
  %v2377 = vld [vmem:[%s5 + $0x28] sm:$0xf]
  %v2378 = vld [vmem:[%s5 + $0x2c] sm:$0xf]
  %v2379 = vld [vmem:[%s5 + $0x30] sm:$0xf]
  %v2380 = vld [vmem:[%s5 + $0x34] sm:$0xf]
  %v2381 = vld [vmem:[%s5 + $0x38] sm:$0xf]
  %v2382 = vld [vmem:[%s5 + $0x3c] sm:$0xf]
  %v2383 = vld [vmem:[%s5 + $0x40] sm:$0xf]
  %v2384 = vld [vmem:[%s5 + $0x44] sm:$0xf]
  %v2385 = vld [vmem:[%s5 + $0x48] sm:$0xf]
  %v2386 = vld [vmem:[%s5 + $0x4c] sm:$0xf]
  %v2387 = vld [vmem:[%s5 + $0x50] sm:$0xf]
  %v2388 = vld [vmem:[%s5 + $0x54] sm:$0xf]
  %v2389 = vld [vmem:[%s5 + $0x58] sm:$0xf]
  %v2390 = vld [vmem:[%s5 + $0x5c] sm:$0xf]
  %v2391 = vld [vmem:[%s5 + $0x60] sm:$0xf]
  %v2392 = vld [vmem:[%s5 + $0x64] sm:$0xf]
  %v2393 = vld [vmem:[%s5 + $0x68] sm:$0xf]
  %v2394 = vld [vmem:[%s5 + $0x6c] sm:$0xf]
  %v2395 = vld [vmem:[%s5 + $0x70] sm:$0xf]
  %v2396 = vld [vmem:[%s5 + $0x74] sm:$0xf]
  %v2397 = vld [vmem:[%s5 + $0x78] sm:$0xf]
  %v2398 = vld [vmem:[%s5 + $0x7c] sm:$0xf]
  %v2399 = vld [vmem:[%s6] sm:$0x1]
  %v2401 = vperm.slane %v2399, 0
  %v2435 = vunpack.c.l.b16 %v2367
  %v2436 = vunpack.c.l.b16 %v2368
  %v2437 = vunpack.c.l.b16 %v2369
  %v2438 = vunpack.c.l.b16 %v2370
  %v2439 = vunpack.c.l.b16 %v2371
  %v2440 = vunpack.c.l.b16 %v2372
  %v2441 = vunpack.c.l.b16 %v2373
  %v2442 = vunpack.c.l.b16 %v2374
  %v2443 = vunpack.c.l.b16 %v2375
  %v2444 = vunpack.c.l.b16 %v2376
  %v2445 = vunpack.c.l.b16 %v2377
  %v2446 = vunpack.c.l.b16 %v2378
  %v2447 = vunpack.c.l.b16 %v2379
  %v2448 = vunpack.c.l.b16 %v2380
  %v2449 = vunpack.c.l.b16 %v2381
  %v2450 = vunpack.c.l.b16 %v2382
  %v2451 = vunpack.c.l.b16 %v2383
  %v2452 = vunpack.c.l.b16 %v2384
  %v2453 = vunpack.c.l.b16 %v2385
  %v2454 = vunpack.c.l.b16 %v2386
  %v2455 = vunpack.c.l.b16 %v2387
  %v2456 = vunpack.c.l.b16 %v2388
  %v2457 = vunpack.c.l.b16 %v2389
  %v2458 = vunpack.c.l.b16 %v2390
  %v2459 = vunpack.c.l.b16 %v2391
  %v2460 = vunpack.c.l.b16 %v2392
  %v2461 = vunpack.c.l.b16 %v2393
  %v2462 = vunpack.c.l.b16 %v2394
  %v2463 = vunpack.c.l.b16 %v2395
  %v2464 = vunpack.c.l.b16 %v2396
  %v2465 = vunpack.c.l.b16 %v2397
  %v2466 = vunpack.c.l.b16 %v2398
  %v2467 = vpack.c.b16 %v2436, %v2435
  %v2468 = vpack.c.b16 %v2438, %v2437
  %v2469 = vpack.c.b16 %v2440, %v2439
  %v2470 = vpack.c.b16 %v2442, %v2441
  %v2471 = vpack.c.b16 %v2444, %v2443
  %v2472 = vpack.c.b16 %v2446, %v2445
  %v2473 = vpack.c.b16 %v2448, %v2447
  %v2474 = vpack.c.b16 %v2450, %v2449
  %v2475 = vpack.c.b16 %v2452, %v2451
  %v2476 = vpack.c.b16 %v2454, %v2453
  %v2477 = vpack.c.b16 %v2456, %v2455
  %v2478 = vpack.c.b16 %v2458, %v2457
  %v2479 = vpack.c.b16 %v2460, %v2459
  %v2480 = vpack.c.b16 %v2462, %v2461
  %v2481 = vpack.c.b16 %v2464, %v2463
  %v2482 = vpack.c.b16 %v2466, %v2465
  %2499 = vmatpush.bf16.msra.mxu0 %v2474
  %2500 = vmatpush.bf16.msra.mxu0 %v2473
  %2501 = vmatpush.bf16.msra.mxu0 %v2472
  %2502 = vmatpush.bf16.msra.mxu0 %v2471
  %2503 = vmatpush.bf16.msra.mxu0 %v2470
  %2504 = vmatpush.bf16.msra.mxu0 %v2469
  %2505 = vmatpush.bf16.msra.mxu0 %v2468
  %2506 = vmatpush.bf16.msra.mxu0 %v2467
  %2507 = vmatmul.bf16.gmra.mxu0 %v2335
  %v2508 = vpop.f32.mrf.mxu0
  %v2509 = vadd.f32 %v2401, %v2508
  %v2510 = vpop.f32.mrf.mxu0
  %v2511 = vadd.f32 %v2401, %v2510
  %2512 = vmatmul.bf16.gmra.mxu0 %v2337
  %v2513 = vpop.f32.mrf.mxu0
  %v2514 = vadd.f32 %v2401, %v2513
  %v2515 = vpop.f32.mrf.mxu0
  %v2516 = vadd.f32 %v2401, %v2515
  %2517 = vmatmul.bf16.gmra.mxu0 %v2339
  %v2518 = vpop.f32.mrf.mxu0
  %v2519 = vadd.f32 %v2401, %v2518
  %v2520 = vpop.f32.mrf.mxu0
  %v2521 = vadd.f32 %v2401, %v2520
  %2522 = vmatmul.bf16.gmra.mxu0 %v2341
  %v2523 = vpop.f32.mrf.mxu0
  %v2524 = vadd.f32 %v2401, %v2523
  %v2525 = vpop.f32.mrf.mxu0
  %v2526 = vadd.f32 %v2401, %v2525
  %2527 = vmatmul.bf16.gmra.mxu0 %v2343
  %v2528 = vpop.f32.mrf.mxu0
  %v2529 = vadd.f32 %v2401, %v2528
  %v2530 = vpop.f32.mrf.mxu0
  %v2531 = vadd.f32 %v2401, %v2530
  %2532 = vmatmul.bf16.gmra.mxu0 %v2345
  %v2533 = vpop.f32.mrf.mxu0
  %v2534 = vadd.f32 %v2401, %v2533
  %v2535 = vpop.f32.mrf.mxu0
  %v2536 = vadd.f32 %v2401, %v2535
  %2537 = vmatmul.bf16.gmra.mxu0 %v2347
  %v2538 = vpop.f32.mrf.mxu0
  %v2539 = vadd.f32 %v2401, %v2538
  %v2540 = vpop.f32.mrf.mxu0
  %v2541 = vadd.f32 %v2401, %v2540
  %2542 = vmatmul.bf16.gmra.mxu0 %v2349
  %v2543 = vpop.f32.mrf.mxu0
  %v2544 = vadd.f32 %v2401, %v2543
  %v2545 = vpop.f32.mrf.mxu0
  %v2546 = vadd.f32 %v2401, %v2545
  %2547 = vmatmul.bf16.gmra.mxu0 %v2351
  %v2548 = vpop.f32.mrf.mxu0
  %v2549 = vadd.f32 %v2401, %v2548
  %v2550 = vpop.f32.mrf.mxu0
  %v2551 = vadd.f32 %v2401, %v2550
  %2552 = vmatmul.bf16.gmra.mxu0 %v2353
  %v2553 = vpop.f32.mrf.mxu0
  %v2554 = vadd.f32 %v2401, %v2553
  %v2555 = vpop.f32.mrf.mxu0
  %v2556 = vadd.f32 %v2401, %v2555
  %2557 = vmatmul.bf16.gmra.mxu0 %v2355
  %v2558 = vpop.f32.mrf.mxu0
  %v2559 = vadd.f32 %v2401, %v2558
  %v2560 = vpop.f32.mrf.mxu0
  %v2561 = vadd.f32 %v2401, %v2560
  %2562 = vmatmul.bf16.gmra.mxu0 %v2357
  %v2563 = vpop.f32.mrf.mxu0
  %v2564 = vadd.f32 %v2401, %v2563
  %v2565 = vpop.f32.mrf.mxu0
  %v2566 = vadd.f32 %v2401, %v2565
  %2567 = vmatmul.bf16.gmra.mxu0 %v2359
  %v2568 = vpop.f32.mrf.mxu0
  %v2569 = vadd.f32 %v2401, %v2568
  %v2570 = vpop.f32.mrf.mxu0
  %v2571 = vadd.f32 %v2401, %v2570
  %2572 = vmatmul.bf16.gmra.mxu0 %v2361
  %v2573 = vpop.f32.mrf.mxu0
  %v2574 = vadd.f32 %v2401, %v2573
  %v2575 = vpop.f32.mrf.mxu0
  %v2576 = vadd.f32 %v2401, %v2575
  %2577 = vmatmul.bf16.gmra.mxu0 %v2363
  %v2578 = vpop.f32.mrf.mxu0
  %v2579 = vadd.f32 %v2401, %v2578
  %v2580 = vpop.f32.mrf.mxu0
  %v2581 = vadd.f32 %v2401, %v2580
  %2582 = vmatmul.bf16.gmra.mxu0 %v2365
  %v2583 = vpop.f32.mrf.mxu0
  %v2584 = vadd.f32 %v2401, %v2583
  %v2585 = vpop.f32.mrf.mxu0
  %v2586 = vadd.f32 %v2401, %v2585
  %2587 = vdwg.mxu0
  %2588 = vmatpush.bf16.msra.mxu0 %v2482
  %2589 = vmatpush.bf16.msra.mxu0 %v2481
  %2590 = vmatpush.bf16.msra.mxu0 %v2480
  %2591 = vmatpush.bf16.msra.mxu0 %v2479
  %2592 = vmatpush.bf16.msra.mxu0 %v2478
  %2593 = vmatpush.bf16.msra.mxu0 %v2477
  %2594 = vmatpush.bf16.msra.mxu0 %v2476
  %2595 = vmatpush.bf16.msra.mxu0 %v2475
  %2596 = vmatmul.bf16.gmra.mxu0 %v2336
  %v2597 = vpop.f32.mrf.mxu0
  %v2598 = vadd.f32 %v2509, %v2597
  %v2599 = vpop.f32.mrf.mxu0
  %v2600 = vadd.f32 %v2511, %v2599
  %2601 = vmatmul.bf16.gmra.mxu0 %v2338
  %v2602 = vpop.f32.mrf.mxu0
  %v2603 = vadd.f32 %v2514, %v2602
  %v2604 = vpop.f32.mrf.mxu0
  %v2605 = vadd.f32 %v2516, %v2604
  %2606 = vmatmul.bf16.gmra.mxu0 %v2340
  %v2607 = vpop.f32.mrf.mxu0
  %v2608 = vadd.f32 %v2519, %v2607
  %v2609 = vpop.f32.mrf.mxu0
  %v2610 = vadd.f32 %v2521, %v2609
  %2611 = vmatmul.bf16.gmra.mxu0 %v2342
  %v2612 = vpop.f32.mrf.mxu0
  %v2613 = vadd.f32 %v2524, %v2612
  %v2614 = vpop.f32.mrf.mxu0
  %v2615 = vadd.f32 %v2526, %v2614
  %2616 = vmatmul.bf16.gmra.mxu0 %v2344
  %v2617 = vpop.f32.mrf.mxu0
  %v2618 = vadd.f32 %v2529, %v2617
  %v2619 = vpop.f32.mrf.mxu0
  %v2620 = vadd.f32 %v2531, %v2619
  %2621 = vmatmul.bf16.gmra.mxu0 %v2346
  %v2622 = vpop.f32.mrf.mxu0
  %v2623 = vadd.f32 %v2534, %v2622
  %v2624 = vpop.f32.mrf.mxu0
  %v2625 = vadd.f32 %v2536, %v2624
  %2626 = vmatmul.bf16.gmra.mxu0 %v2348
  %v2627 = vpop.f32.mrf.mxu0
  %v2628 = vadd.f32 %v2539, %v2627
  %v2629 = vpop.f32.mrf.mxu0
  %v2630 = vadd.f32 %v2541, %v2629
  %2631 = vmatmul.bf16.gmra.mxu0 %v2350
  %v2632 = vpop.f32.mrf.mxu0
  %v2633 = vadd.f32 %v2544, %v2632
  %v2634 = vpop.f32.mrf.mxu0
  %v2635 = vadd.f32 %v2546, %v2634
  %2636 = vmatmul.bf16.gmra.mxu0 %v2352
  %v2637 = vpop.f32.mrf.mxu0
  %v2638 = vadd.f32 %v2549, %v2637
  %v2639 = vpop.f32.mrf.mxu0
  %v2640 = vadd.f32 %v2551, %v2639
  %2641 = vmatmul.bf16.gmra.mxu0 %v2354
  %v2642 = vpop.f32.mrf.mxu0
  %v2643 = vadd.f32 %v2554, %v2642
  %v2644 = vpop.f32.mrf.mxu0
  %v2645 = vadd.f32 %v2556, %v2644
  %2646 = vmatmul.bf16.gmra.mxu0 %v2356
  %v2647 = vpop.f32.mrf.mxu0
  %v2648 = vadd.f32 %v2559, %v2647
  %v2649 = vpop.f32.mrf.mxu0
  %v2650 = vadd.f32 %v2561, %v2649
  %2651 = vmatmul.bf16.gmra.mxu0 %v2358
  %v2652 = vpop.f32.mrf.mxu0
  %v2653 = vadd.f32 %v2564, %v2652
  %v2654 = vpop.f32.mrf.mxu0
  %v2655 = vadd.f32 %v2566, %v2654
  %2656 = vmatmul.bf16.gmra.mxu0 %v2360
  %v2657 = vpop.f32.mrf.mxu0
  %v2658 = vadd.f32 %v2569, %v2657
  %v2659 = vpop.f32.mrf.mxu0
  %v2660 = vadd.f32 %v2571, %v2659
  %2661 = vmatmul.bf16.gmra.mxu0 %v2362
  %v2662 = vpop.f32.mrf.mxu0
  %v2663 = vadd.f32 %v2574, %v2662
  %v2664 = vpop.f32.mrf.mxu0
  %v2665 = vadd.f32 %v2576, %v2664
  %2666 = vmatmul.bf16.gmra.mxu0 %v2364
  %v2667 = vpop.f32.mrf.mxu0
  %v2668 = vadd.f32 %v2579, %v2667
  %v2669 = vpop.f32.mrf.mxu0
  %v2670 = vadd.f32 %v2581, %v2669
  %2671 = vmatmul.bf16.gmra.mxu0 %v2366
  %v2672 = vpop.f32.mrf.mxu0
  %v2673 = vadd.f32 %v2584, %v2672
  %v2674 = vpop.f32.mrf.mxu0
  %v2675 = vadd.f32 %v2586, %v2674
  %2676 = vdwg.mxu0
  %vm2677 = vcmp.gt.f32.partialorder %v2598, 0.0
  %vm2678 = vcmp.gt.f32.partialorder %v2600, 0.0
  %vm2679 = vcmp.gt.f32.partialorder %v2603, 0.0
  %vm2680 = vcmp.gt.f32.partialorder %v2605, 0.0
  %vm2681 = vcmp.gt.f32.partialorder %v2608, 0.0
  %vm2682 = vcmp.gt.f32.partialorder %v2610, 0.0
  %vm2683 = vcmp.gt.f32.partialorder %v2613, 0.0
  %vm2684 = vcmp.gt.f32.partialorder %v2615, 0.0
  %vm2685 = vcmp.gt.f32.partialorder %v2618, 0.0
  %vm2686 = vcmp.gt.f32.partialorder %v2620, 0.0
  %vm2687 = vcmp.gt.f32.partialorder %v2623, 0.0
  %vm2688 = vcmp.gt.f32.partialorder %v2625, 0.0
  %vm2689 = vcmp.gt.f32.partialorder %v2628, 0.0
  %vm2690 = vcmp.gt.f32.partialorder %v2630, 0.0
  %vm2691 = vcmp.gt.f32.partialorder %v2633, 0.0
  %vm2692 = vcmp.gt.f32.partialorder %v2635, 0.0
  %vm2693 = vcmp.gt.f32.partialorder %v2638, 0.0
  %vm2694 = vcmp.gt.f32.partialorder %v2640, 0.0
  %vm2695 = vcmp.gt.f32.partialorder %v2643, 0.0
  %vm2696 = vcmp.gt.f32.partialorder %v2645, 0.0
  %vm2697 = vcmp.gt.f32.partialorder %v2648, 0.0
  %vm2698 = vcmp.gt.f32.partialorder %v2650, 0.0
  %vm2699 = vcmp.gt.f32.partialorder %v2653, 0.0
  %vm2700 = vcmp.gt.f32.partialorder %v2655, 0.0
  %vm2701 = vcmp.gt.f32.partialorder %v2658, 0.0
  %vm2702 = vcmp.gt.f32.partialorder %v2660, 0.0
  %vm2703 = vcmp.gt.f32.partialorder %v2663, 0.0
  %vm2704 = vcmp.gt.f32.partialorder %v2665, 0.0
  %vm2705 = vcmp.gt.f32.partialorder %v2668, 0.0
  %vm2706 = vcmp.gt.f32.partialorder %v2670, 0.0
  %vm2707 = vcmp.gt.f32.partialorder %v2673, 0.0
  %vm2708 = vcmp.gt.f32.partialorder %v2675, 0.0
  %v2709 = vmul.f32 %v2598, 0.2
  %v2710 = vmul.f32 %v2600, 0.2
  %v2711 = vmul.f32 %v2603, 0.2
  %v2712 = vmul.f32 %v2605, 0.2
  %v2713 = vmul.f32 %v2608, 0.2
  %v2714 = vmul.f32 %v2610, 0.2
  %v2715 = vmul.f32 %v2613, 0.2
  %v2716 = vmul.f32 %v2615, 0.2
  %v2717 = vmul.f32 %v2618, 0.2
  %v2718 = vmul.f32 %v2620, 0.2
  %v2719 = vmul.f32 %v2623, 0.2
  %v2720 = vmul.f32 %v2625, 0.2
  %v2721 = vmul.f32 %v2628, 0.2
  %v2722 = vmul.f32 %v2630, 0.2
  %v2723 = vmul.f32 %v2633, 0.2
  %v2724 = vmul.f32 %v2635, 0.2
  %v2725 = vmul.f32 %v2638, 0.2
  %v2726 = vmul.f32 %v2640, 0.2
  %v2727 = vmul.f32 %v2643, 0.2
  %v2728 = vmul.f32 %v2645, 0.2
  %v2729 = vmul.f32 %v2648, 0.2
  %v2730 = vmul.f32 %v2650, 0.2
  %v2731 = vmul.f32 %v2653, 0.2
  %v2732 = vmul.f32 %v2655, 0.2
  %v2733 = vmul.f32 %v2658, 0.2
  %v2734 = vmul.f32 %v2660, 0.2
  %v2735 = vmul.f32 %v2663, 0.2
  %v2736 = vmul.f32 %v2665, 0.2
  %v2737 = vmul.f32 %v2668, 0.2
  %v2738 = vmul.f32 %v2670, 0.2
  %v2739 = vmul.f32 %v2673, 0.2
  %v2740 = vmul.f32 %v2675, 0.2
  %v2741 = vsel %vm2677, %v2598, %v2709
  %v2742 = vsel %vm2678, %v2600, %v2710
  %v2743 = vsel %vm2679, %v2603, %v2711
  %v2744 = vsel %vm2680, %v2605, %v2712
  %v2745 = vsel %vm2681, %v2608, %v2713
  %v2746 = vsel %vm2682, %v2610, %v2714
  %v2747 = vsel %vm2683, %v2613, %v2715
  %v2748 = vsel %vm2684, %v2615, %v2716
  %v2749 = vsel %vm2685, %v2618, %v2717
  %v2750 = vsel %vm2686, %v2620, %v2718
  %v2751 = vsel %vm2687, %v2623, %v2719
  %v2752 = vsel %vm2688, %v2625, %v2720
  %v2753 = vsel %vm2689, %v2628, %v2721
  %v2754 = vsel %vm2690, %v2630, %v2722
  %v2755 = vsel %vm2691, %v2633, %v2723
  %v2756 = vsel %vm2692, %v2635, %v2724
  %v2757 = vsel %vm2693, %v2638, %v2725
  %v2758 = vsel %vm2694, %v2640, %v2726
  %v2759 = vsel %vm2695, %v2643, %v2727
  %v2760 = vsel %vm2696, %v2645, %v2728
  %v2761 = vsel %vm2697, %v2648, %v2729
  %v2762 = vsel %vm2698, %v2650, %v2730
  %v2763 = vsel %vm2699, %v2653, %v2731
  %v2764 = vsel %vm2700, %v2655, %v2732
  %v2765 = vsel %vm2701, %v2658, %v2733
  %v2766 = vsel %vm2702, %v2660, %v2734
  %v2767 = vsel %vm2703, %v2663, %v2735
  %v2768 = vsel %vm2704, %v2665, %v2736
  %v2769 = vsel %vm2705, %v2668, %v2737
  %v2770 = vsel %vm2706, %v2670, %v2738
  %v2771 = vsel %vm2707, %v2673, %v2739
  %v2772 = vsel %vm2708, %v2675, %v2740
  %v2773 = vld [vmem:[%s7] sm:$0xf]
  %v2774 = vpack.c.bf16 %v2742, %v2741
  %v2775 = vpack.c.bf16 %v2744, %v2743
  %v2776 = vpack.c.bf16 %v2746, %v2745
  %v2777 = vpack.c.bf16 %v2748, %v2747
  %v2778 = vpack.c.bf16 %v2750, %v2749
  %v2779 = vpack.c.bf16 %v2752, %v2751
  %v2780 = vpack.c.bf16 %v2754, %v2753
  %v2781 = vpack.c.bf16 %v2756, %v2755
  %v2782 = vpack.c.bf16 %v2758, %v2757
  %v2783 = vpack.c.bf16 %v2760, %v2759
  %v2784 = vpack.c.bf16 %v2762, %v2761
  %v2785 = vpack.c.bf16 %v2764, %v2763
  %v2786 = vpack.c.bf16 %v2766, %v2765
  %v2787 = vpack.c.bf16 %v2768, %v2767
  %v2788 = vpack.c.bf16 %v2770, %v2769
  %v2789 = vpack.c.bf16 %v2772, %v2771
  %2790 = vmatpush.bf16.xpose.msra.mxu0 %v2781
  %2791 = vmatpush.bf16.xpose.msra.mxu0 %v2780
  %2792 = vmatpush.bf16.xpose.msra.mxu0 %v2779
  %2793 = vmatpush.bf16.xpose.msra.mxu0 %v2778
  %2794 = vmatpush.bf16.xpose.msra.mxu0 %v2777
  %2795 = vmatpush.bf16.xpose.msra.mxu0 %v2776
  %2796 = vmatpush.bf16.xpose.msra.mxu0 %v2775
  %2797 = vmatpush.bf16.xpose.msra.mxu0 %v2774
  %2798 = vmatmul.bf16.gmra.mxu0 %v2773
  %v2799 = vpop.f32.mrf.mxu0
  %v2800 = vadd.f32 0.0, %v2799
  %v2801 = vpop.f32.mrf.mxu0
  %2802 = vdwg.mxu0
  %2803 = vmatpush.bf16.xpose.msra.mxu0 %v2789
  %2804 = vmatpush.bf16.xpose.msra.mxu0 %v2788
  %2805 = vmatpush.bf16.xpose.msra.mxu0 %v2787
  %2806 = vmatpush.bf16.xpose.msra.mxu0 %v2786
  %2807 = vmatpush.bf16.xpose.msra.mxu0 %v2785
  %2808 = vmatpush.bf16.xpose.msra.mxu0 %v2784
  %2809 = vmatpush.bf16.xpose.msra.mxu0 %v2783
  %2810 = vmatpush.bf16.xpose.msra.mxu0 %v2782
  %2811 = vmatmul.bf16.gmra.mxu0 %v2773
  %v2812 = vpop.f32.mrf.mxu0
  %v2813 = vadd.f32 0.0, %v2812
  %v2814 = vpop.f32.mrf.mxu0
  %2815 = vdwg.mxu0
  %s2816 = sld [smem:[#allocation2]]
  %v2817 = vstv %s2816
  %v2818 = vadd.f32 %v2800, %v2817
  %v2819 = vadd.f32 %v2813, %v2817
  %v2820 = vsub.f32 0.0, %v2818
  %v2821 = vsub.f32 0.0, %v2819
  %v2822 = vmul.f32 %v2820, 1.442695
  %v2823 = vpow.pop %v2822
  %v2824 = vmul.f32 %v2821, 1.442695
  %v2825 = vpow.pop %v2824
  %v2826 = vadd.f32 %v2823, 1.0
  %v2827 = vadd.f32 %v2825, 1.0
  %v2828 = vrcp.pop %v2826
  %v2829 = vrcp.pop %v2827
  %v2832 = vrot.slane %v2829, 7
  %vm2833 = vcmask 1040384
  %v2834 = vsel %vm2833, %v2828, %v2832
  %v2836 = vlaneseq
  %vm2837 = vcmp.ge.s32.totalorder %v2836, 0
  %vm2838 = vcmp.lt.s32.totalorder %v2836, 256
  %vm2839 = vmand %vm2837, %vm2838
  %2840 = vst.msk [vmem:[%s9] sm:$0x3] %vm2839, %v2834
  // Predicated region
  $region38: #{discriminator_forward.1} parent=0 // pred_check
    _
  $region39: #{discriminator_forward.1} parent=0 // pred_check_branch
    %2842 = sbr.rel (0) target = $region41
  $region40: #{discriminator_forward.1} parent=0 // pred_region
    _
  $region41: #{discriminator_forward.1} parent=0 // pred_fallthru
    _
  // Predicated region
  $region42: #{discriminator_forward.1} parent=0 // pred_check
    _
  $region43: #{discriminator_forward.1} parent=0 // pred_check_branch
    %2844 = sbr.rel (0) target = $region45
  $region44: #{discriminator_forward.1} parent=0 // pred_region
    _
  $region45: #{discriminator_forward.1} parent=0 // pred_fallthru
    _

</llo_original>
